<compile_context>
chip_gen: v7x
topology: tpu7x:2x2x1
jax: 0.10.0
libtpu: 0.0.40
codegen_flags: <defaults>
</compile_context>

<pallas_src>
import functools

import jax
import jax.numpy as jnp
import numpy as np
from jax import lax
from jax.experimental import pallas as pl
from jax.experimental.pallas import tpu as pltpu


_OFFSETS = tuple((dy, dx) for dy in (-1, 0, 1) for dx in (-1, 0, 1))


# ----------------------------- Pallas kernel --------------------------------

def _attention_fused_kernel(x_ref, m_ref, w1_ref, s1_ref, b1_ref,
                            w2_ref, s2_ref, b2_ref, w3_ref, b3_ref,
                            o_ref, xc1_ref, *, W, cp):
    lanes = x_ref.shape[-1]                       # B_pack * H * W
    # Masks are host-precomputed (hoisted out of the per-step body); each is
    # a (1, lanes) 0/1 f32 row resident in VMEM across all grid steps.
    masks = [m_ref[t] for t in range(9)]

    def tap(a, t):
        # zero-padded 3x3 tap t of activation a (C, lanes), via a lane roll
        # over the packed axis + the per-lane border mask.
        dy, dx = _OFFSETS[t]
        s = dy * W + dx
        shifted = a if s == 0 else pltpu.roll(a, shift=(-s) % lanes, axis=1)
        return shifted * masks[t]

    # layer 1: 3x3 conv (Cin -> 64) as one deep-K bf16 matmul + BN + ReLU.
    x = x_ref[0]                                  # (cp, lanes) f32
    for t in range(9):
        xc1_ref[t * cp:(t + 1) * cp, :] = tap(x, t).astype(jnp.bfloat16)
    a1 = jnp.dot(w1_ref[...], xc1_ref[...],
                 preferred_element_type=jnp.float32)          # (64, lanes) f32
    a1 = jnp.maximum(a1 * s1_ref[...] + b1_ref[...], 0.0)

    # layer 2: 3x3 conv (64 -> 32) as 9 accumulating per-tap bf16 matmuls
    # directly from the in-VMEM a1 (no materialized im2col scratch).
    acc = jnp.zeros((32, lanes), jnp.float32)
    for t in range(9):
        acc = acc + jnp.dot(w2_ref[t], tap(a1, t).astype(jnp.bfloat16),
                            preferred_element_type=jnp.float32)
    a2 = jnp.maximum(acc * s2_ref[...] + b2_ref[...], 0.0)    # (32, lanes) f32

    # layer 3: 1x1 conv (32 -> 1) + sigmoid; lane-dense (1, lanes) output.
    y = jnp.sum(a2 * w3_ref[...], axis=0, keepdims=True) + b3_ref[...]
    o_ref[0] = jax.nn.sigmoid(y)


# --------------------------- params & forward pass ---------------------------

def _fold_bn(conv_bias, gamma, beta, mean, var, eps=1e-5):
    s = gamma / jnp.sqrt(var + eps)
    return s, (conv_bias - mean) * s + beta


def _choose_pack(n, hw, target_lanes=2048):
    """Images packed per grid step: amortize step overhead but keep >=2 steps."""
    if n <= 1:
        return 1
    b = min(max(1, target_lanes // hw), max(1, n // 2))
    while n % b:
        b -= 1
    return b


def attention_forward(params, x_nchw):
    n, cin, h, w = x_nchw.shape
    hw = h * w
    cp = -(-cin // 16) * 16                       # pad Cin to a bf16 sublane multiple

    b_pack = _choose_pack(n, hw)
    g = n // b_pack
    lanes = b_pack * hw

    # NCHW -> (G, Cp, B*HW): channels on sublanes, B images packed along lanes.
    x3 = (x_nchw.reshape(g, b_pack, cin, hw)
                 .transpose(0, 2, 1, 3)
                 .reshape(g, cin, lanes))
    x3 = jnp.pad(x3, ((0, 0), (0, cp - cin), (0, 0)))

    # per-lane 0/1 border masks for the 9 taps, computed from lane % HW so the
    # lane-axis roll never mixes adjacent packed images.
    j = np.arange(lanes)
    row = (j % hw) // w
    col = (j % hw) % w
    masks = np.stack([((row + dy >= 0) & (row + dy < h) &
                       (col + dx >= 0) & (col + dx < w)).astype(np.float32)
                      for dy, dx in _OFFSETS]).reshape(9, 1, lanes)
    masks = jnp.asarray(masks)

    # fold BN (eval mode) into per-channel scale / bias columns (C, 1)
    s1, e1 = _fold_bn(params["b1"], *params["bn1"])
    s2, e2 = _fold_bn(params["b2"], *params["bn2"])

    # weights as bf16 MXU operands (f32 accumulation happens in-kernel)
    w1 = jnp.pad(params["w1"], ((0, 0), (0, 0), (0, cp - cin), (0, 0)))
    w1t = w1.reshape(9 * cp, 64).T.astype(jnp.bfloat16)            # (64, 9*cp)
    w2t = (params["w2"].reshape(9, 64, 32)
                        .transpose(0, 2, 1)
                        .astype(jnp.bfloat16))                     # (9, 32, 64)
    w3c = params["w3"].reshape(32, 1)                              # f32
    b3 = params["b3"].reshape(1, 1)

    kernel = functools.partial(_attention_fused_kernel, W=w, cp=cp)
    out = pl.pallas_call(
        kernel,
        out_shape=jax.ShapeDtypeStruct((g, 1, lanes), jnp.float32),
        grid_spec=pltpu.PrefetchScalarGridSpec(
            num_scalar_prefetch=0,
            grid=(g,),
            in_specs=[
                pl.BlockSpec((1, cp, lanes), lambda i: (i, 0, 0)),   # x (packed)
                pl.BlockSpec((9, 1, lanes), lambda i: (0, 0, 0)),    # border masks
                pl.BlockSpec((64, 9 * cp), lambda i: (0, 0)),        # w1^T (bf16)
                pl.BlockSpec((64, 1), lambda i: (0, 0)),             # bn1 scale
                pl.BlockSpec((64, 1), lambda i: (0, 0)),             # bn1 bias
                pl.BlockSpec((9, 32, 64), lambda i: (0, 0, 0)),      # w2 taps (bf16)
                pl.BlockSpec((32, 1), lambda i: (0, 0)),             # bn2 scale
                pl.BlockSpec((32, 1), lambda i: (0, 0)),             # bn2 bias
                pl.BlockSpec((32, 1), lambda i: (0, 0)),             # w3
                pl.BlockSpec((1, 1), lambda i: (0, 0)),              # b3
            ],
            out_specs=pl.BlockSpec((1, 1, lanes), lambda i: (i, 0, 0)),
            scratch_shapes=[
                pltpu.VMEM((9 * cp, lanes), jnp.bfloat16),           # layer-1 im2col
            ],
        ),
        compiler_params=pltpu.CompilerParams(
            dimension_semantics=("parallel",),
            vmem_limit_bytes=48 * 1024 * 1024),
    )(x3, masks, w1t, s1.reshape(-1, 1), e1.reshape(-1, 1),
      w2t, s2.reshape(-1, 1), e2.reshape(-1, 1), w3c, b3)

    # (G, 1, B*HW) -> NCHW (Cout = 1)
    out = (out.reshape(g, 1, b_pack, hw)
              .transpose(0, 2, 1, 3)
              .reshape(n, 1, h, w))
    return out


def init_attention_params(key, in_dim):
    """Deterministic synthetic parameters (shapes match the PyTorch module)."""
    ks = jax.random.split(key, 10)

    def conv_w(k, kh, kw, cin, cout):             # HWIO
        bound = 1.0 / np.sqrt(cin * kh * kw)
        return jax.random.uniform(k, (kh, kw, cin, cout), jnp.float32,
                                  -bound, bound)

    def conv_b(k, kh, kw, cin, cout):
        bound = 1.0 / np.sqrt(cin * kh * kw)
        return jax.random.uniform(k, (cout,), jnp.float32, -bound, bound)

    def bn_params(k, c):
        k1, k2, k3 = jax.random.split(k, 3)
        gamma = 1.0 + 0.1 * jax.random.normal(k1, (c,), jnp.float32)
        beta = 0.1 * jax.random.normal(k2, (c,), jnp.float32)
        mean = 0.1 * jax.random.normal(k3, (c,), jnp.float32)
        var = jnp.linspace(0.5, 1.5, c).astype(jnp.float32)
        return (gamma, beta, mean, var)

    return {
        "w1": conv_w(ks[0], 3, 3, in_dim, 64),
        "b1": conv_b(ks[1], 3, 3, in_dim, 64),
        "bn1": bn_params(ks[2], 64),
        "w2": conv_w(ks[3], 3, 3, 64, 32),
        "b2": conv_b(ks[4], 3, 3, 64, 32),
        "bn2": bn_params(ks[5], 32),
        "w3": conv_w(ks[6], 1, 1, 32, 1),
        "b3": conv_b(ks[7], 1, 1, 32, 1),
    }


# -------------------------- pure-JAX reference check -------------------------

def reference_forward(params, x_nchw, eps=1e-5):
    def conv(x, w_hwio, b):
        y = lax.conv_general_dilated(
            x, w_hwio, (1, 1), "SAME",
            dimension_numbers=("NCHW", "HWIO", "NCHW"))
        return y + b[None, :, None, None]

    def bn(y, g, bta, m, v):
        return ((y - m[None, :, None, None])
                / jnp.sqrt(v[None, :, None, None] + eps)
                * g[None, :, None, None] + bta[None, :, None, None])

    y = jax.nn.relu(bn(conv(x_nchw, params["w1"], params["b1"]), *params["bn1"]))
    y = jax.nn.relu(bn(conv(y, params["w2"], params["b2"]), *params["bn2"]))
    return jax.nn.sigmoid(conv(y, params["w3"], params["b3"]))


# ----------------------------------- main ------------------------------------

if __name__ == "__main__":
    in_dim = 4
    key = jax.random.PRNGKey(0)
    kx, kp = jax.random.split(key)

    x = jax.random.normal(kx, (2, in_dim, 16, 16), jnp.float32)   # NCHW
    params = init_attention_params(kp, in_dim)

    out = jax.jit(attention_forward)(params, x)
    out = jax.block_until_ready(out)

    assert out.shape == (2, 1, 16, 16), out.shape
    ref = reference_forward(params, x)
    # bf16 MXU operands (f32 accumulation) -> loosened tolerance vs f32 ref.
    np.testing.assert_allclose(np.asarray(out), np.asarray(ref),
                               rtol=2e-2, atol=2e-2)
    print("KERNEL_OK")
</pallas_src>

<mosaic_0001>
module attributes {stable_mosaic.version = 11 : i64} {
  func.func @_attention_fused_kernel(%arg0: i32, %arg1: memref<1x16x256xf32, #tpu.memory_space<vmem>>, %arg2: memref<9x1x256xf32, #tpu.memory_space<vmem>>, %arg3: memref<64x144xbf16, #tpu.memory_space<vmem>>, %arg4: memref<64x1xf32, #tpu.memory_space<vmem>>, %arg5: memref<64x1xf32, #tpu.memory_space<vmem>>, %arg6: memref<9x32x64xbf16, #tpu.memory_space<vmem>>, %arg7: memref<32x1xf32, #tpu.memory_space<vmem>>, %arg8: memref<32x1xf32, #tpu.memory_space<vmem>>, %arg9: memref<32x1xf32, #tpu.memory_space<vmem>>, %arg10: memref<1x1xf32, #tpu.memory_space<vmem>>, %arg11: memref<1x1x256xf32, #tpu.memory_space<vmem>>, %arg12: memref<144x256xbf16, #tpu.memory_space<vmem>>) attributes {dimension_semantics = [#tpu.dimension_semantics<parallel>], iteration_bounds = array<i64: 2>, scalar_prefetch = 0 : i64, scratch_operands = 1 : i64, tpu.core_type = #tpu.core_type<tc>, window_params = [{transform_indices = @transform_0, window_bounds = array<i64: 1, 16, 256>}, {pipeline_mode = #tpu.pipeline_mode<synchronous>, transform_indices = @transform_1, window_bounds = array<i64: 9, 1, 256>}, {pipeline_mode = #tpu.pipeline_mode<synchronous>, transform_indices = @transform_2, window_bounds = array<i64: 64, 144>}, {pipeline_mode = #tpu.pipeline_mode<synchronous>, transform_indices = @transform_3, window_bounds = array<i64: 64, 1>}, {pipeline_mode = #tpu.pipeline_mode<synchronous>, transform_indices = @transform_4, window_bounds = array<i64: 64, 1>}, {pipeline_mode = #tpu.pipeline_mode<synchronous>, transform_indices = @transform_5, window_bounds = array<i64: 9, 32, 64>}, {pipeline_mode = #tpu.pipeline_mode<synchronous>, transform_indices = @transform_6, window_bounds = array<i64: 32, 1>}, {pipeline_mode = #tpu.pipeline_mode<synchronous>, transform_indices = @transform_7, window_bounds = array<i64: 32, 1>}, {pipeline_mode = #tpu.pipeline_mode<synchronous>, transform_indices = @transform_8, window_bounds = array<i64: 32, 1>}, {pipeline_mode = #tpu.pipeline_mode<synchronous>, transform_indices = @transform_9, window_bounds = array<i64: 1, 1>}, {transform_indices = @transform_10, window_bounds = array<i64: 1, 1, 256>}]} {
    %c0 = arith.constant 0 : index
    %c0_0 = arith.constant 0 : index
    %c0_1 = arith.constant 0 : index
    %0 = vector.load %arg2[%c0, %c0_0, %c0_1] : memref<9x1x256xf32, #tpu.memory_space<vmem>>, vector<1x1x256xf32>
    %1 = vector.shape_cast %0 : vector<1x1x256xf32> to vector<1x256xf32>
    %c1 = arith.constant 1 : index
    %c0_2 = arith.constant 0 : index
    %c0_3 = arith.constant 0 : index
    %2 = vector.load %arg2[%c1, %c0_2, %c0_3] : memref<9x1x256xf32, #tpu.memory_space<vmem>>, vector<1x1x256xf32>
    %3 = vector.shape_cast %2 : vector<1x1x256xf32> to vector<1x256xf32>
    %c2 = arith.constant 2 : index
    %c0_4 = arith.constant 0 : index
    %c0_5 = arith.constant 0 : index
    %4 = vector.load %arg2[%c2, %c0_4, %c0_5] : memref<9x1x256xf32, #tpu.memory_space<vmem>>, vector<1x1x256xf32>
    %5 = vector.shape_cast %4 : vector<1x1x256xf32> to vector<1x256xf32>
    %c3 = arith.constant 3 : index
    %c0_6 = arith.constant 0 : index
    %c0_7 = arith.constant 0 : index
    %6 = vector.load %arg2[%c3, %c0_6, %c0_7] : memref<9x1x256xf32, #tpu.memory_space<vmem>>, vector<1x1x256xf32>
    %7 = vector.shape_cast %6 : vector<1x1x256xf32> to vector<1x256xf32>
    %c4 = arith.constant 4 : index
    %c0_8 = arith.constant 0 : index
    %c0_9 = arith.constant 0 : index
    %8 = vector.load %arg2[%c4, %c0_8, %c0_9] : memref<9x1x256xf32, #tpu.memory_space<vmem>>, vector<1x1x256xf32>
    %9 = vector.shape_cast %8 : vector<1x1x256xf32> to vector<1x256xf32>
    %c5 = arith.constant 5 : index
    %c0_10 = arith.constant 0 : index
    %c0_11 = arith.constant 0 : index
    %10 = vector.load %arg2[%c5, %c0_10, %c0_11] : memref<9x1x256xf32, #tpu.memory_space<vmem>>, vector<1x1x256xf32>
    %11 = vector.shape_cast %10 : vector<1x1x256xf32> to vector<1x256xf32>
    %c6 = arith.constant 6 : index
    %c0_12 = arith.constant 0 : index
    %c0_13 = arith.constant 0 : index
    %12 = vector.load %arg2[%c6, %c0_12, %c0_13] : memref<9x1x256xf32, #tpu.memory_space<vmem>>, vector<1x1x256xf32>
    %13 = vector.shape_cast %12 : vector<1x1x256xf32> to vector<1x256xf32>
    %c7 = arith.constant 7 : index
    %c0_14 = arith.constant 0 : index
    %c0_15 = arith.constant 0 : index
    %14 = vector.load %arg2[%c7, %c0_14, %c0_15] : memref<9x1x256xf32, #tpu.memory_space<vmem>>, vector<1x1x256xf32>
    %15 = vector.shape_cast %14 : vector<1x1x256xf32> to vector<1x256xf32>
    %c8 = arith.constant 8 : index
    %c0_16 = arith.constant 0 : index
    %c0_17 = arith.constant 0 : index
    %16 = vector.load %arg2[%c8, %c0_16, %c0_17] : memref<9x1x256xf32, #tpu.memory_space<vmem>>, vector<1x1x256xf32>
    %17 = vector.shape_cast %16 : vector<1x1x256xf32> to vector<1x256xf32>
    %c0_18 = arith.constant 0 : index
    %c0_19 = arith.constant 0 : index
    %c0_20 = arith.constant 0 : index
    %18 = vector.load %arg1[%c0_18, %c0_19, %c0_20] : memref<1x16x256xf32, #tpu.memory_space<vmem>>, vector<1x16x256xf32>
    %19 = vector.shape_cast %18 : vector<1x16x256xf32> to vector<16x256xf32>
    %c17_i32 = arith.constant 17 : i32
    %20 = tpu.dynamic_rotate %19 by %c17_i32 dim 1 : vector<16x256xf32>, i32 -> vector<16x256xf32>
    %21 = vector.broadcast %1 : vector<1x256xf32> to vector<16x256xf32>
    %22 = arith.mulf %20, %21 : vector<16x256xf32>
    %23 = arith.truncf %22 : vector<16x256xf32> to vector<16x256xbf16>
    %c0_21 = arith.constant 0 : index
    %c0_22 = arith.constant 0 : index
    %24 = vector.load %arg12[%c0_21, %c0_22] : memref<144x256xbf16, #tpu.memory_space<vmem>>, vector<16x256xbf16>
    tpu.vector_store %arg12[%c0_21, %c0_22], %23 {strides = array<i32>} : memref<144x256xbf16, #tpu.memory_space<vmem>>, vector<16x256xbf16>,
    %c16_i32 = arith.constant 16 : i32
    %25 = tpu.dynamic_rotate %19 by %c16_i32 dim 1 : vector<16x256xf32>, i32 -> vector<16x256xf32>
    %26 = vector.broadcast %3 : vector<1x256xf32> to vector<16x256xf32>
    %27 = arith.mulf %25, %26 : vector<16x256xf32>
    %28 = arith.truncf %27 : vector<16x256xf32> to vector<16x256xbf16>
    %c16 = arith.constant 16 : index
    %c0_23 = arith.constant 0 : index
    %29 = vector.load %arg12[%c16, %c0_23] : memref<144x256xbf16, #tpu.memory_space<vmem>>, vector<16x256xbf16>
    tpu.vector_store %arg12[%c16, %c0_23], %28 {strides = array<i32>} : memref<144x256xbf16, #tpu.memory_space<vmem>>, vector<16x256xbf16>,
    %c15_i32 = arith.constant 15 : i32
    %30 = tpu.dynamic_rotate %19 by %c15_i32 dim 1 : vector<16x256xf32>, i32 -> vector<16x256xf32>
    %31 = vector.broadcast %5 : vector<1x256xf32> to vector<16x256xf32>
    %32 = arith.mulf %30, %31 : vector<16x256xf32>
    %33 = arith.truncf %32 : vector<16x256xf32> to vector<16x256xbf16>
    %c32 = arith.constant 32 : index
    %c0_24 = arith.constant 0 : index
    %34 = vector.load %arg12[%c32, %c0_24] : memref<144x256xbf16, #tpu.memory_space<vmem>>, vector<16x256xbf16>
    tpu.vector_store %arg12[%c32, %c0_24], %33 {strides = array<i32>} : memref<144x256xbf16, #tpu.memory_space<vmem>>, vector<16x256xbf16>,
    %c1_i32 = arith.constant 1 : i32
    %35 = tpu.dynamic_rotate %19 by %c1_i32 dim 1 : vector<16x256xf32>, i32 -> vector<16x256xf32>
    %36 = vector.broadcast %7 : vector<1x256xf32> to vector<16x256xf32>
    %37 = arith.mulf %35, %36 : vector<16x256xf32>
    %38 = arith.truncf %37 : vector<16x256xf32> to vector<16x256xbf16>
    %c48 = arith.constant 48 : index
    %c0_25 = arith.constant 0 : index
    %39 = vector.load %arg12[%c48, %c0_25] : memref<144x256xbf16, #tpu.memory_space<vmem>>, vector<16x256xbf16>
    tpu.vector_store %arg12[%c48, %c0_25], %38 {strides = array<i32>} : memref<144x256xbf16, #tpu.memory_space<vmem>>, vector<16x256xbf16>,
    %40 = vector.broadcast %9 : vector<1x256xf32> to vector<16x256xf32>
    %41 = arith.mulf %19, %40 : vector<16x256xf32>
    %42 = arith.truncf %41 : vector<16x256xf32> to vector<16x256xbf16>
    %c64 = arith.constant 64 : index
    %c0_26 = arith.constant 0 : index
    %43 = vector.load %arg12[%c64, %c0_26] : memref<144x256xbf16, #tpu.memory_space<vmem>>, vector<16x256xbf16>
    tpu.vector_store %arg12[%c64, %c0_26], %42 {strides = array<i32>} : memref<144x256xbf16, #tpu.memory_space<vmem>>, vector<16x256xbf16>,
    %c255_i32 = arith.constant 255 : i32
    %44 = tpu.dynamic_rotate %19 by %c255_i32 dim 1 : vector<16x256xf32>, i32 -> vector<16x256xf32>
    %45 = vector.broadcast %11 : vector<1x256xf32> to vector<16x256xf32>
    %46 = arith.mulf %44, %45 : vector<16x256xf32>
    %47 = arith.truncf %46 : vector<16x256xf32> to vector<16x256xbf16>
    %c80 = arith.constant 80 : index
    %c0_27 = arith.constant 0 : index
    %48 = vector.load %arg12[%c80, %c0_27] : memref<144x256xbf16, #tpu.memory_space<vmem>>, vector<16x256xbf16>
    tpu.vector_store %arg12[%c80, %c0_27], %47 {strides = array<i32>} : memref<144x256xbf16, #tpu.memory_space<vmem>>, vector<16x256xbf16>,
    %c241_i32 = arith.constant 241 : i32
    %49 = tpu.dynamic_rotate %19 by %c241_i32 dim 1 : vector<16x256xf32>, i32 -> vector<16x256xf32>
    %50 = vector.broadcast %13 : vector<1x256xf32> to vector<16x256xf32>
    %51 = arith.mulf %49, %50 : vector<16x256xf32>
    %52 = arith.truncf %51 : vector<16x256xf32> to vector<16x256xbf16>
    %c96 = arith.constant 96 : index
    %c0_28 = arith.constant 0 : index
    %53 = vector.load %arg12[%c96, %c0_28] : memref<144x256xbf16, #tpu.memory_space<vmem>>, vector<16x256xbf16>
    tpu.vector_store %arg12[%c96, %c0_28], %52 {strides = array<i32>} : memref<144x256xbf16, #tpu.memory_space<vmem>>, vector<16x256xbf16>,
    %c240_i32 = arith.constant 240 : i32
    %54 = tpu.dynamic_rotate %19 by %c240_i32 dim 1 : vector<16x256xf32>, i32 -> vector<16x256xf32>
    %55 = vector.broadcast %15 : vector<1x256xf32> to vector<16x256xf32>
    %56 = arith.mulf %54, %55 : vector<16x256xf32>
    %57 = arith.truncf %56 : vector<16x256xf32> to vector<16x256xbf16>
    %c112 = arith.constant 112 : index
    %c0_29 = arith.constant 0 : index
    %58 = vector.load %arg12[%c112, %c0_29] : memref<144x256xbf16, #tpu.memory_space<vmem>>, vector<16x256xbf16>
    tpu.vector_store %arg12[%c112, %c0_29], %57 {strides = array<i32>} : memref<144x256xbf16, #tpu.memory_space<vmem>>, vector<16x256xbf16>,
    %c239_i32 = arith.constant 239 : i32
    %59 = tpu.dynamic_rotate %19 by %c239_i32 dim 1 : vector<16x256xf32>, i32 -> vector<16x256xf32>
    %60 = vector.broadcast %17 : vector<1x256xf32> to vector<16x256xf32>
    %61 = arith.mulf %59, %60 : vector<16x256xf32>
    %62 = arith.truncf %61 : vector<16x256xf32> to vector<16x256xbf16>
    %c128 = arith.constant 128 : index
    %c0_30 = arith.constant 0 : index
    %63 = vector.load %arg12[%c128, %c0_30] : memref<144x256xbf16, #tpu.memory_space<vmem>>, vector<16x256xbf16>
    tpu.vector_store %arg12[%c128, %c0_30], %62 {strides = array<i32>} : memref<144x256xbf16, #tpu.memory_space<vmem>>, vector<16x256xbf16>,
    %c0_31 = arith.constant 0 : index
    %c0_32 = arith.constant 0 : index
    %64 = vector.load %arg3[%c0_31, %c0_32] : memref<64x144xbf16, #tpu.memory_space<vmem>>, vector<64x144xbf16>
    %c0_33 = arith.constant 0 : index
    %c0_34 = arith.constant 0 : index
    %65 = vector.load %arg12[%c0_33, %c0_34] : memref<144x256xbf16, #tpu.memory_space<vmem>>, vector<144x256xbf16>
    %cst = arith.constant dense<0.000000e+00> : vector<64x256xf32>
    %66 = tpu.matmul %64, %65, %cst {dimension_numbers = #tpu.dot_dimension_numbers<[1], [0], [0], [1], [0, 0, 1, 1], [], []>} : vector<64x144xbf16>, vector<144x256xbf16>, vector<64x256xf32> -> vector<64x256xf32>
    %c0_35 = arith.constant 0 : index
    %c0_36 = arith.constant 0 : index
    %67 = vector.load %arg4[%c0_35, %c0_36] : memref<64x1xf32, #tpu.memory_space<vmem>>, vector<64x1xf32>
    %68 = vector.broadcast %67 : vector<64x1xf32> to vector<64x256xf32>
    %69 = arith.mulf %66, %68 : vector<64x256xf32>
    %c0_37 = arith.constant 0 : index
    %c0_38 = arith.constant 0 : index
    %70 = vector.load %arg5[%c0_37, %c0_38] : memref<64x1xf32, #tpu.memory_space<vmem>>, vector<64x1xf32>
    %71 = vector.broadcast %70 : vector<64x1xf32> to vector<64x256xf32>
    %72 = arith.addf %69, %71 : vector<64x256xf32>
    %cst_39 = arith.constant 0.000000e+00 : f32
    %73 = vector.broadcast %cst_39 : f32 to vector<64x256xf32>
    %74 = arith.maximumf %72, %73 : vector<64x256xf32>
    %cst_40 = arith.constant 0.000000e+00 : f32
    %75 = vector.broadcast %cst_40 : f32 to vector<32x256xf32>
    %c0_41 = arith.constant 0 : index
    %c0_42 = arith.constant 0 : index
    %c0_43 = arith.constant 0 : index
    %76 = vector.load %arg6[%c0_41, %c0_42, %c0_43] : memref<9x32x64xbf16, #tpu.memory_space<vmem>>, vector<1x32x64xbf16>
    %77 = vector.shape_cast %76 : vector<1x32x64xbf16> to vector<32x64xbf16>
    %c17_i32_44 = arith.constant 17 : i32
    %78 = tpu.dynamic_rotate %74 by %c17_i32_44 dim 1 : vector<64x256xf32>, i32 -> vector<64x256xf32>
    %79 = vector.broadcast %1 : vector<1x256xf32> to vector<64x256xf32>
    %80 = arith.mulf %78, %79 : vector<64x256xf32>
    %81 = arith.truncf %80 : vector<64x256xf32> to vector<64x256xbf16>
    %cst_45 = arith.constant dense<0.000000e+00> : vector<32x256xf32>
    %82 = tpu.matmul %77, %81, %cst_45 {dimension_numbers = #tpu.dot_dimension_numbers<[1], [0], [0], [1], [0, 0, 1, 1], [], []>} : vector<32x64xbf16>, vector<64x256xbf16>, vector<32x256xf32> -> vector<32x256xf32>
    %83 = arith.addf %75, %82 : vector<32x256xf32>
    %c1_46 = arith.constant 1 : index
    %c0_47 = arith.constant 0 : index
    %c0_48 = arith.constant 0 : index
    %84 = vector.load %arg6[%c1_46, %c0_47, %c0_48] : memref<9x32x64xbf16, #tpu.memory_space<vmem>>, vector<1x32x64xbf16>
    %85 = vector.shape_cast %84 : vector<1x32x64xbf16> to vector<32x64xbf16>
    %c16_i32_49 = arith.constant 16 : i32
    %86 = tpu.dynamic_rotate %74 by %c16_i32_49 dim 1 : vector<64x256xf32>, i32 -> vector<64x256xf32>
    %87 = vector.broadcast %3 : vector<1x256xf32> to vector<64x256xf32>
    %88 = arith.mulf %86, %87 : vector<64x256xf32>
    %89 = arith.truncf %88 : vector<64x256xf32> to vector<64x256xbf16>
    %cst_50 = arith.constant dense<0.000000e+00> : vector<32x256xf32>
    %90 = tpu.matmul %85, %89, %cst_50 {dimension_numbers = #tpu.dot_dimension_numbers<[1], [0], [0], [1], [0, 0, 1, 1], [], []>} : vector<32x64xbf16>, vector<64x256xbf16>, vector<32x256xf32> -> vector<32x256xf32>
    %91 = arith.addf %83, %90 : vector<32x256xf32>
    %c2_51 = arith.constant 2 : index
    %c0_52 = arith.constant 0 : index
    %c0_53 = arith.constant 0 : index
    %92 = vector.load %arg6[%c2_51, %c0_52, %c0_53] : memref<9x32x64xbf16, #tpu.memory_space<vmem>>, vector<1x32x64xbf16>
    %93 = vector.shape_cast %92 : vector<1x32x64xbf16> to vector<32x64xbf16>
    %c15_i32_54 = arith.constant 15 : i32
    %94 = tpu.dynamic_rotate %74 by %c15_i32_54 dim 1 : vector<64x256xf32>, i32 -> vector<64x256xf32>
    %95 = vector.broadcast %5 : vector<1x256xf32> to vector<64x256xf32>
    %96 = arith.mulf %94, %95 : vector<64x256xf32>
    %97 = arith.truncf %96 : vector<64x256xf32> to vector<64x256xbf16>
    %cst_55 = arith.constant dense<0.000000e+00> : vector<32x256xf32>
    %98 = tpu.matmul %93, %97, %cst_55 {dimension_numbers = #tpu.dot_dimension_numbers<[1], [0], [0], [1], [0, 0, 1, 1], [], []>} : vector<32x64xbf16>, vector<64x256xbf16>, vector<32x256xf32> -> vector<32x256xf32>
    %99 = arith.addf %91, %98 : vector<32x256xf32>
    %c3_56 = arith.constant 3 : index
    %c0_57 = arith.constant 0 : index
    %c0_58 = arith.constant 0 : index
    %100 = vector.load %arg6[%c3_56, %c0_57, %c0_58] : memref<9x32x64xbf16, #tpu.memory_space<vmem>>, vector<1x32x64xbf16>
    %101 = vector.shape_cast %100 : vector<1x32x64xbf16> to vector<32x64xbf16>
    %c1_i32_59 = arith.constant 1 : i32
    %102 = tpu.dynamic_rotate %74 by %c1_i32_59 dim 1 : vector<64x256xf32>, i32 -> vector<64x256xf32>
    %103 = vector.broadcast %7 : vector<1x256xf32> to vector<64x256xf32>
    %104 = arith.mulf %102, %103 : vector<64x256xf32>
    %105 = arith.truncf %104 : vector<64x256xf32> to vector<64x256xbf16>
    %cst_60 = arith.constant dense<0.000000e+00> : vector<32x256xf32>
    %106 = tpu.matmul %101, %105, %cst_60 {dimension_numbers = #tpu.dot_dimension_numbers<[1], [0], [0], [1], [0, 0, 1, 1], [], []>} : vector<32x64xbf16>, vector<64x256xbf16>, vector<32x256xf32> -> vector<32x256xf32>
    %107 = arith.addf %99, %106 : vector<32x256xf32>
    %c4_61 = arith.constant 4 : index
    %c0_62 = arith.constant 0 : index
    %c0_63 = arith.constant 0 : index
    %108 = vector.load %arg6[%c4_61, %c0_62, %c0_63] : memref<9x32x64xbf16, #tpu.memory_space<vmem>>, vector<1x32x64xbf16>
    %109 = vector.shape_cast %108 : vector<1x32x64xbf16> to vector<32x64xbf16>
    %110 = vector.broadcast %9 : vector<1x256xf32> to vector<64x256xf32>
    %111 = arith.mulf %74, %110 : vector<64x256xf32>
    %112 = arith.truncf %111 : vector<64x256xf32> to vector<64x256xbf16>
    %cst_64 = arith.constant dense<0.000000e+00> : vector<32x256xf32>
    %113 = tpu.matmul %109, %112, %cst_64 {dimension_numbers = #tpu.dot_dimension_numbers<[1], [0], [0], [1], [0, 0, 1, 1], [], []>} : vector<32x64xbf16>, vector<64x256xbf16>, vector<32x256xf32> -> vector<32x256xf32>
    %114 = arith.addf %107, %113 : vector<32x256xf32>
    %c5_65 = arith.constant 5 : index
    %c0_66 = arith.constant 0 : index
    %c0_67 = arith.constant 0 : index
    %115 = vector.load %arg6[%c5_65, %c0_66, %c0_67] : memref<9x32x64xbf16, #tpu.memory_space<vmem>>, vector<1x32x64xbf16>
    %116 = vector.shape_cast %115 : vector<1x32x64xbf16> to vector<32x64xbf16>
    %c255_i32_68 = arith.constant 255 : i32
    %117 = tpu.dynamic_rotate %74 by %c255_i32_68 dim 1 : vector<64x256xf32>, i32 -> vector<64x256xf32>
    %118 = vector.broadcast %11 : vector<1x256xf32> to vector<64x256xf32>
    %119 = arith.mulf %117, %118 : vector<64x256xf32>
    %120 = arith.truncf %119 : vector<64x256xf32> to vector<64x256xbf16>
    %cst_69 = arith.constant dense<0.000000e+00> : vector<32x256xf32>
    %121 = tpu.matmul %116, %120, %cst_69 {dimension_numbers = #tpu.dot_dimension_numbers<[1], [0], [0], [1], [0, 0, 1, 1], [], []>} : vector<32x64xbf16>, vector<64x256xbf16>, vector<32x256xf32> -> vector<32x256xf32>
    %122 = arith.addf %114, %121 : vector<32x256xf32>
    %c6_70 = arith.constant 6 : index
    %c0_71 = arith.constant 0 : index
    %c0_72 = arith.constant 0 : index
    %123 = vector.load %arg6[%c6_70, %c0_71, %c0_72] : memref<9x32x64xbf16, #tpu.memory_space<vmem>>, vector<1x32x64xbf16>
    %124 = vector.shape_cast %123 : vector<1x32x64xbf16> to vector<32x64xbf16>
    %c241_i32_73 = arith.constant 241 : i32
    %125 = tpu.dynamic_rotate %74 by %c241_i32_73 dim 1 : vector<64x256xf32>, i32 -> vector<64x256xf32>
    %126 = vector.broadcast %13 : vector<1x256xf32> to vector<64x256xf32>
    %127 = arith.mulf %125, %126 : vector<64x256xf32>
    %128 = arith.truncf %127 : vector<64x256xf32> to vector<64x256xbf16>
    %cst_74 = arith.constant dense<0.000000e+00> : vector<32x256xf32>
    %129 = tpu.matmul %124, %128, %cst_74 {dimension_numbers = #tpu.dot_dimension_numbers<[1], [0], [0], [1], [0, 0, 1, 1], [], []>} : vector<32x64xbf16>, vector<64x256xbf16>, vector<32x256xf32> -> vector<32x256xf32>
    %130 = arith.addf %122, %129 : vector<32x256xf32>
    %c7_75 = arith.constant 7 : index
    %c0_76 = arith.constant 0 : index
    %c0_77 = arith.constant 0 : index
    %131 = vector.load %arg6[%c7_75, %c0_76, %c0_77] : memref<9x32x64xbf16, #tpu.memory_space<vmem>>, vector<1x32x64xbf16>
    %132 = vector.shape_cast %131 : vector<1x32x64xbf16> to vector<32x64xbf16>
    %c240_i32_78 = arith.constant 240 : i32
    %133 = tpu.dynamic_rotate %74 by %c240_i32_78 dim 1 : vector<64x256xf32>, i32 -> vector<64x256xf32>
    %134 = vector.broadcast %15 : vector<1x256xf32> to vector<64x256xf32>
    %135 = arith.mulf %133, %134 : vector<64x256xf32>
    %136 = arith.truncf %135 : vector<64x256xf32> to vector<64x256xbf16>
    %cst_79 = arith.constant dense<0.000000e+00> : vector<32x256xf32>
    %137 = tpu.matmul %132, %136, %cst_79 {dimension_numbers = #tpu.dot_dimension_numbers<[1], [0], [0], [1], [0, 0, 1, 1], [], []>} : vector<32x64xbf16>, vector<64x256xbf16>, vector<32x256xf32> -> vector<32x256xf32>
    %138 = arith.addf %130, %137 : vector<32x256xf32>
    %c8_80 = arith.constant 8 : index
    %c0_81 = arith.constant 0 : index
    %c0_82 = arith.constant 0 : index
    %139 = vector.load %arg6[%c8_80, %c0_81, %c0_82] : memref<9x32x64xbf16, #tpu.memory_space<vmem>>, vector<1x32x64xbf16>
    %140 = vector.shape_cast %139 : vector<1x32x64xbf16> to vector<32x64xbf16>
    %c239_i32_83 = arith.constant 239 : i32
    %141 = tpu.dynamic_rotate %74 by %c239_i32_83 dim 1 : vector<64x256xf32>, i32 -> vector<64x256xf32>
    %142 = vector.broadcast %17 : vector<1x256xf32> to vector<64x256xf32>
    %143 = arith.mulf %141, %142 : vector<64x256xf32>
    %144 = arith.truncf %143 : vector<64x256xf32> to vector<64x256xbf16>
    %cst_84 = arith.constant dense<0.000000e+00> : vector<32x256xf32>
    %145 = tpu.matmul %140, %144, %cst_84 {dimension_numbers = #tpu.dot_dimension_numbers<[1], [0], [0], [1], [0, 0, 1, 1], [], []>} : vector<32x64xbf16>, vector<64x256xbf16>, vector<32x256xf32> -> vector<32x256xf32>
    %146 = arith.addf %138, %145 : vector<32x256xf32>
    %c0_85 = arith.constant 0 : index
    %c0_86 = arith.constant 0 : index
    %147 = vector.load %arg7[%c0_85, %c0_86] : memref<32x1xf32, #tpu.memory_space<vmem>>, vector<32x1xf32>
    %148 = vector.broadcast %147 : vector<32x1xf32> to vector<32x256xf32>
    %149 = arith.mulf %146, %148 : vector<32x256xf32>
    %c0_87 = arith.constant 0 : index
    %c0_88 = arith.constant 0 : index
    %150 = vector.load %arg8[%c0_87, %c0_88] : memref<32x1xf32, #tpu.memory_space<vmem>>, vector<32x1xf32>
    %151 = vector.broadcast %150 : vector<32x1xf32> to vector<32x256xf32>
    %152 = arith.addf %149, %151 : vector<32x256xf32>
    %cst_89 = arith.constant 0.000000e+00 : f32
    %153 = vector.broadcast %cst_89 : f32 to vector<32x256xf32>
    %154 = arith.maximumf %152, %153 : vector<32x256xf32>
    %c0_90 = arith.constant 0 : index
    %c0_91 = arith.constant 0 : index
    %155 = vector.load %arg9[%c0_90, %c0_91] : memref<32x1xf32, #tpu.memory_space<vmem>>, vector<32x1xf32>
    %156 = vector.broadcast %155 : vector<32x1xf32> to vector<32x256xf32>
    %157 = arith.mulf %154, %156 : vector<32x256xf32>
    %cst_92 = arith.constant dense<0.000000e+00> : vector<256xf32>
    %158 = vector.multi_reduction <add>, %157, %cst_92 [0] : vector<32x256xf32> to vector<256xf32>
    %159 = vector.shape_cast %158 : vector<256xf32> to vector<1x256xf32>
    %c0_93 = arith.constant 0 : index
    %c0_94 = arith.constant 0 : index
    %160 = vector.load %arg10[%c0_93, %c0_94] : memref<1x1xf32, #tpu.memory_space<vmem>>, vector<1x1xf32>
    %161 = vector.broadcast %160 : vector<1x1xf32> to vector<1x256xf32>
    %162 = arith.addf %159, %161 : vector<1x256xf32>
    %163 = arith.negf %162 : vector<1x256xf32>
    %164 = math.exp %163 : vector<1x256xf32>
    %cst_95 = arith.constant 1.000000e+00 : f32
    %165 = vector.broadcast %cst_95 : f32 to vector<1x256xf32>
    %166 = arith.addf %165, %164 : vector<1x256xf32>
    %167 = arith.divf %165, %166 : vector<1x256xf32>
    %c0_96 = arith.constant 0 : index
    %c0_97 = arith.constant 0 : index
    %c0_98 = arith.constant 0 : index
    %168 = vector.load %arg11[%c0_96, %c0_97, %c0_98] : memref<1x1x256xf32, #tpu.memory_space<vmem>>, vector<1x1x256xf32>
    %169 = vector.shape_cast %168 : vector<1x1x256xf32> to vector<1x256xf32>
    %170 = vector.shape_cast %167 : vector<1x256xf32> to vector<1x1x256xf32>
    tpu.vector_store %arg11[%c0_96, %c0_97, %c0_98], %170 {strides = array<i32>} : memref<1x1x256xf32, #tpu.memory_space<vmem>>, vector<1x1x256xf32>,
    return
  }
  func.func @transform_0(%arg0: i32) -> (i32, i32, i32) {
    %c0_i32 = arith.constant 0 : i32
    %c0_i32_0 = arith.constant 0 : i32
    %c0_i32_1 = arith.constant 0 : i32
    return %arg0, %c0_i32, %c0_i32_0 : i32, i32, i32
  }
  func.func @transform_1(%arg0: i32) -> (i32, i32, i32) {
    %c0_i32 = arith.constant 0 : i32
    %c0_i32_0 = arith.constant 0 : i32
    %c0_i32_1 = arith.constant 0 : i32
    %c0_i32_2 = arith.constant 0 : i32
    return %c0_i32, %c0_i32_0, %c0_i32_1 : i32, i32, i32
  }
  func.func @transform_2(%arg0: i32) -> (i32, i32) {
    %c0_i32 = arith.constant 0 : i32
    %c0_i32_0 = arith.constant 0 : i32
    %c0_i32_1 = arith.constant 0 : i32
    return %c0_i32, %c0_i32_0 : i32, i32
  }
  func.func @transform_3(%arg0: i32) -> (i32, i32) {
    %c0_i32 = arith.constant 0 : i32
    %c0_i32_0 = arith.constant 0 : i32
    %c0_i32_1 = arith.constant 0 : i32
    return %c0_i32, %c0_i32_0 : i32, i32
  }
  func.func @transform_4(%arg0: i32) -> (i32, i32) {
    %c0_i32 = arith.constant 0 : i32
    %c0_i32_0 = arith.constant 0 : i32
    %c0_i32_1 = arith.constant 0 : i32
    return %c0_i32, %c0_i32_0 : i32, i32
  }
  func.func @transform_5(%arg0: i32) -> (i32, i32, i32) {
    %c0_i32 = arith.constant 0 : i32
    %c0_i32_0 = arith.constant 0 : i32
    %c0_i32_1 = arith.constant 0 : i32
    %c0_i32_2 = arith.constant 0 : i32
    return %c0_i32, %c0_i32_0, %c0_i32_1 : i32, i32, i32
  }
  func.func @transform_6(%arg0: i32) -> (i32, i32) {
    %c0_i32 = arith.constant 0 : i32
    %c0_i32_0 = arith.constant 0 : i32
    %c0_i32_1 = arith.constant 0 : i32
    return %c0_i32, %c0_i32_0 : i32, i32
  }
  func.func @transform_7(%arg0: i32) -> (i32, i32) {
    %c0_i32 = arith.constant 0 : i32
    %c0_i32_0 = arith.constant 0 : i32
    %c0_i32_1 = arith.constant 0 : i32
    return %c0_i32, %c0_i32_0 : i32, i32
  }
  func.func @transform_8(%arg0: i32) -> (i32, i32) {
    %c0_i32 = arith.constant 0 : i32
    %c0_i32_0 = arith.constant 0 : i32
    %c0_i32_1 = arith.constant 0 : i32
    return %c0_i32, %c0_i32_0 : i32, i32
  }
  func.func @transform_9(%arg0: i32) -> (i32, i32) {
    %c0_i32 = arith.constant 0 : i32
    %c0_i32_0 = arith.constant 0 : i32
    %c0_i32_1 = arith.constant 0 : i32
    return %c0_i32, %c0_i32_0 : i32, i32
  }
  func.func @transform_10(%arg0: i32) -> (i32, i32, i32) {
    %c0_i32 = arith.constant 0 : i32
    %c0_i32_0 = arith.constant 0 : i32
    %c0_i32_1 = arith.constant 0 : i32
    return %arg0, %c0_i32, %c0_i32_0 : i32, i32, i32
  }
}

</mosaic_0001>

<llo_original>
// kernel: attention_forward.1
$region0: #{attention_forward.1}
  #allocation0 [shape = 'u32[]', space=smem, size = 0x4, offset = 0x4, fixed_abs, tag = 'smem constant byte address 0x4 - core index']
  #allocation1 [shape = 'u32[144,128]{1,0:T(1,128)}', space=vmem, size = 0x12000, scoped, tag = 'internal scratch']
  #allocation2 [shape = 'bf16[144,256]{1,0:T(16,128)(2,1)}', space=vmem, size = 0x12000, scoped, tag = 'scratch operand']
  #allocation3 [shape = 'f32[1,1]{1,0:T(1,128)S(1)}', space=vmem, size = 0x200, scoped, tag = 'scoped memory for attention_forward.1']
  %s0 = inlined_call_operand.vmem [shape: f32[2,16,256], index: 0, kind: input, shape index: {}]
  %s1 = inlined_call_operand.vmem [shape: f32[9,1,256], index: 1, kind: input, shape index: {}]
  %s2 = inlined_call_operand.vmem [shape: bf16[64,144], index: 2, kind: input, shape index: {}]
  %s3 = inlined_call_operand.vmem [shape: f32[64,1], index: 3, kind: input, shape index: {}]
  %s4 = inlined_call_operand.vmem [shape: f32[64,1], index: 4, kind: input, shape index: {}]
  %s5 = inlined_call_operand.vmem [shape: bf16[9,32,64], index: 5, kind: input, shape index: {}]
  %s6 = inlined_call_operand.vmem [shape: f32[32,1], index: 6, kind: input, shape index: {}]
  %s7 = inlined_call_operand.vmem [shape: f32[32,1], index: 7, kind: input, shape index: {}]
  %s8 = inlined_call_operand.vmem [shape: f32[32,1], index: 8, kind: input, shape index: {}]
  %s9 = inlined_call_operand.<no memory space> [shape: f32[1,1], index: 9, kind: input, shape index: {}]
  %s10 = inlined_call_operand.vmem [shape: f32[2,1,256], index: 10, kind: output, shape index: {}]
  %s11 = sld [smem:[#allocation0]]
  $region73: #{attention_forward.1} parent=0
    _
  %s13 = ssub.s32 1, %s11
  %s14 = scalar_select 0, %s13, %s11
  %v15 = vstv %s9
  %16 = vst [vmem:[#allocation3] sm:$0x1] %v15
  loop: start=0, step=1, limit=4
  $region2: #{attention_forward.1} parent=0 // loop_pre_header
    _
  $region3: #{attention_forward.1} parent=0 // loop_header
    %s18 = sphi 0, %s22
    %p19 = scmp.ge.s32.totalorder %s18, 4
    %s28 = sphi 0, %s30
    %s31 = sphi 0, %s28
    %s32 = sphi 0, %s31
    %s48 = sphi 0, %s32
    %s52 = sphi 0, %s52
    %s54 = sphi 0, %s52
    %s55 = sphi 0, %s54
    %s69 = sphi 0, %s55
    %s73 = sphi 0, %s73
    %s75 = sphi 0, %s73
    %s76 = sphi 0, %s75
    %s90 = sphi 0, %s76
    %s94 = sphi 0, %s94
    %s96 = sphi 0, %s94
    %s97 = sphi 0, %s96
    %s111 = sphi 0, %s97
    %s115 = sphi 0, %s115
    %s117 = sphi 0, %s115
    %s118 = sphi 0, %s117
    %s132 = sphi 0, %s118
    %s136 = sphi 0, %s136
    %s138 = sphi 0, %s136
    %s139 = sphi 0, %s138
    %s153 = sphi 0, %s139
    %s157 = sphi 0, %s157
    %s159 = sphi 0, %s157
    %s160 = sphi 0, %s159
    %s174 = sphi 0, %s160
    %s178 = sphi 0, %s178
    %s180 = sphi 0, %s178
    %s181 = sphi 0, %s180
    %s195 = sphi 0, %s181
    %s199 = sphi 0, %s199
    %s201 = sphi 0, %s199
    %s202 = sphi 0, %s201
    %s216 = sphi 0, %s202
    %s220 = sphi 0, %s220
    %s222 = sphi 0, %s220
    %s223 = sphi 0, %s222
    %s237 = sphi 0, %s223
    %s243 = sphi 0, %s245
    %s246 = sphi 0, %s243
    %s247 = sphi 0, %s246
    %s263 = sphi 0, %s247
  $region4: #{attention_forward.1} parent=0 // loop_header_branch
    %21 = sbr.rel (%p19) target = $region8
  $region5: #{attention_forward.1} parent=0 // loop_body
    %s23 = ssub.s32 %s18, 1
    %s24 = ssub.s32 %s18, 2
    %s25 = sadd.s32 %s18, 1
    %s26 = ssub.s32 %s18, %s25
    %p27 = scmp.eq.s32.totalorder %s26, 0
    %s29 = sadd.s32 %s28, 1
    %s30 = scalar_select %p27, %s28, %s29
    %p33 = pneg %p27
    %p34 = scmp.eq.s32.totalorder %s18, 1
    %p35 = por %p33, %p34
    %p36 = scmp.ne.s32.totalorder %s28, %s31
    %p37 = scmp.eq.s32.totalorder %s18, 0
    %p38 = por %p36, %p37
    %p39 = scmp.ne.s32.totalorder %s28, %s31
    %p40 = scmp.eq.s32.totalorder %s23, 1
    %p41 = por %p39, %p40
    %p42 = scmp.ne.s32.totalorder %s31, %s32
    %p43 = scmp.eq.s32.totalorder %s23, 0
    %p44 = por %p42, %p43
    %p45 = scmp.ne.s32.totalorder %s31, %s32
    %p46 = scmp.eq.s32.totalorder %s24, 1
    %p47 = por %p45, %p46
    %p49 = scmp.ne.s32.totalorder %s32, %s48
    %p50 = scmp.eq.s32.totalorder %s24, 0
    %p51 = por %p49, %p50
    %s53 = sadd.s32 %s52, 1
    %p56 = scmp.eq.s32.totalorder %s18, 1
    %p57 = scmp.ne.s32.totalorder %s52, %s54
    %p58 = scmp.eq.s32.totalorder %s18, 0
    %p59 = por %p57, %p58
    %p60 = scmp.ne.s32.totalorder %s52, %s54
    %p61 = scmp.eq.s32.totalorder %s23, 1
    %p62 = por %p60, %p61
    %p63 = scmp.ne.s32.totalorder %s54, %s55
    %p64 = scmp.eq.s32.totalorder %s23, 0
    %p65 = por %p63, %p64
    %p66 = scmp.ne.s32.totalorder %s54, %s55
    %p67 = scmp.eq.s32.totalorder %s24, 1
    %p68 = por %p66, %p67
    %p70 = scmp.ne.s32.totalorder %s55, %s69
    %p71 = scmp.eq.s32.totalorder %s24, 0
    %p72 = por %p70, %p71
    %s74 = sadd.s32 %s73, 1
    %p77 = scmp.eq.s32.totalorder %s18, 1
    %p78 = scmp.ne.s32.totalorder %s73, %s75
    %p79 = scmp.eq.s32.totalorder %s18, 0
    %p80 = por %p78, %p79
    %p81 = scmp.ne.s32.totalorder %s73, %s75
    %p82 = scmp.eq.s32.totalorder %s23, 1
    %p83 = por %p81, %p82
    %p84 = scmp.ne.s32.totalorder %s75, %s76
    %p85 = scmp.eq.s32.totalorder %s23, 0
    %p86 = por %p84, %p85
    %p87 = scmp.ne.s32.totalorder %s75, %s76
    %p88 = scmp.eq.s32.totalorder %s24, 1
    %p89 = por %p87, %p88
    %p91 = scmp.ne.s32.totalorder %s76, %s90
    %p92 = scmp.eq.s32.totalorder %s24, 0
    %p93 = por %p91, %p92
    %s95 = sadd.s32 %s94, 1
    %p98 = scmp.eq.s32.totalorder %s18, 1
    %p99 = scmp.ne.s32.totalorder %s94, %s96
    %p100 = scmp.eq.s32.totalorder %s18, 0
    %p101 = por %p99, %p100
    %p102 = scmp.ne.s32.totalorder %s94, %s96
    %p103 = scmp.eq.s32.totalorder %s23, 1
    %p104 = por %p102, %p103
    %p105 = scmp.ne.s32.totalorder %s96, %s97
    %p106 = scmp.eq.s32.totalorder %s23, 0
    %p107 = por %p105, %p106
    %p108 = scmp.ne.s32.totalorder %s96, %s97
    %p109 = scmp.eq.s32.totalorder %s24, 1
    %p110 = por %p108, %p109
    %p112 = scmp.ne.s32.totalorder %s97, %s111
    %p113 = scmp.eq.s32.totalorder %s24, 0
    %p114 = por %p112, %p113
    %s116 = sadd.s32 %s115, 1
    %p119 = scmp.eq.s32.totalorder %s18, 1
    %p120 = scmp.ne.s32.totalorder %s115, %s117
    %p121 = scmp.eq.s32.totalorder %s18, 0
    %p122 = por %p120, %p121
    %p123 = scmp.ne.s32.totalorder %s115, %s117
    %p124 = scmp.eq.s32.totalorder %s23, 1
    %p125 = por %p123, %p124
    %p126 = scmp.ne.s32.totalorder %s117, %s118
    %p127 = scmp.eq.s32.totalorder %s23, 0
    %p128 = por %p126, %p127
    %p129 = scmp.ne.s32.totalorder %s117, %s118
    %p130 = scmp.eq.s32.totalorder %s24, 1
    %p131 = por %p129, %p130
    %p133 = scmp.ne.s32.totalorder %s118, %s132
    %p134 = scmp.eq.s32.totalorder %s24, 0
    %p135 = por %p133, %p134
    %s137 = sadd.s32 %s136, 1
    %p140 = scmp.eq.s32.totalorder %s18, 1
    %p141 = scmp.ne.s32.totalorder %s136, %s138
    %p142 = scmp.eq.s32.totalorder %s18, 0
    %p143 = por %p141, %p142
    %p144 = scmp.ne.s32.totalorder %s136, %s138
    %p145 = scmp.eq.s32.totalorder %s23, 1
    %p146 = por %p144, %p145
    %p147 = scmp.ne.s32.totalorder %s138, %s139
    %p148 = scmp.eq.s32.totalorder %s23, 0
    %p149 = por %p147, %p148
    %p150 = scmp.ne.s32.totalorder %s138, %s139
    %p151 = scmp.eq.s32.totalorder %s24, 1
    %p152 = por %p150, %p151
    %p154 = scmp.ne.s32.totalorder %s139, %s153
    %p155 = scmp.eq.s32.totalorder %s24, 0
    %p156 = por %p154, %p155
    %s158 = sadd.s32 %s157, 1
    %p161 = scmp.eq.s32.totalorder %s18, 1
    %p162 = scmp.ne.s32.totalorder %s157, %s159
    %p163 = scmp.eq.s32.totalorder %s18, 0
    %p164 = por %p162, %p163
    %p165 = scmp.ne.s32.totalorder %s157, %s159
    %p166 = scmp.eq.s32.totalorder %s23, 1
    %p167 = por %p165, %p166
    %p168 = scmp.ne.s32.totalorder %s159, %s160
    %p169 = scmp.eq.s32.totalorder %s23, 0
    %p170 = por %p168, %p169
    %p171 = scmp.ne.s32.totalorder %s159, %s160
    %p172 = scmp.eq.s32.totalorder %s24, 1
    %p173 = por %p171, %p172
    %p175 = scmp.ne.s32.totalorder %s160, %s174
    %p176 = scmp.eq.s32.totalorder %s24, 0
    %p177 = por %p175, %p176
    %s179 = sadd.s32 %s178, 1
    %p182 = scmp.eq.s32.totalorder %s18, 1
    %p183 = scmp.ne.s32.totalorder %s178, %s180
    %p184 = scmp.eq.s32.totalorder %s18, 0
    %p185 = por %p183, %p184
    %p186 = scmp.ne.s32.totalorder %s178, %s180
    %p187 = scmp.eq.s32.totalorder %s23, 1
    %p188 = por %p186, %p187
    %p189 = scmp.ne.s32.totalorder %s180, %s181
    %p190 = scmp.eq.s32.totalorder %s23, 0
    %p191 = por %p189, %p190
    %p192 = scmp.ne.s32.totalorder %s180, %s181
    %p193 = scmp.eq.s32.totalorder %s24, 1
    %p194 = por %p192, %p193
    %p196 = scmp.ne.s32.totalorder %s181, %s195
    %p197 = scmp.eq.s32.totalorder %s24, 0
    %p198 = por %p196, %p197
    %s200 = sadd.s32 %s199, 1
    %p203 = scmp.eq.s32.totalorder %s18, 1
    %p204 = scmp.ne.s32.totalorder %s199, %s201
    %p205 = scmp.eq.s32.totalorder %s18, 0
    %p206 = por %p204, %p205
    %p207 = scmp.ne.s32.totalorder %s199, %s201
    %p208 = scmp.eq.s32.totalorder %s23, 1
    %p209 = por %p207, %p208
    %p210 = scmp.ne.s32.totalorder %s201, %s202
    %p211 = scmp.eq.s32.totalorder %s23, 0
    %p212 = por %p210, %p211
    %p213 = scmp.ne.s32.totalorder %s201, %s202
    %p214 = scmp.eq.s32.totalorder %s24, 1
    %p215 = por %p213, %p214
    %p217 = scmp.ne.s32.totalorder %s202, %s216
    %p218 = scmp.eq.s32.totalorder %s24, 0
    %p219 = por %p217, %p218
    %s221 = sadd.s32 %s220, 1
    %p224 = scmp.eq.s32.totalorder %s18, 1
    %p225 = scmp.ne.s32.totalorder %s220, %s222
    %p226 = scmp.eq.s32.totalorder %s18, 0
    %p227 = por %p225, %p226
    %p228 = scmp.ne.s32.totalorder %s220, %s222
    %p229 = scmp.eq.s32.totalorder %s23, 1
    %p230 = por %p228, %p229
    %p231 = scmp.ne.s32.totalorder %s222, %s223
    %p232 = scmp.eq.s32.totalorder %s23, 0
    %p233 = por %p231, %p232
    %p234 = scmp.ne.s32.totalorder %s222, %s223
    %p235 = scmp.eq.s32.totalorder %s24, 1
    %p236 = por %p234, %p235
    %p238 = scmp.ne.s32.totalorder %s223, %s237
    %p239 = scmp.eq.s32.totalorder %s24, 0
    %p240 = por %p238, %p239
    %s241 = ssub.s32 %s18, %s25
    %p242 = scmp.eq.s32.totalorder %s241, 0
    %s244 = sadd.s32 %s243, 1
    %s245 = scalar_select %p242, %s243, %s244
    %p248 = pneg %p242
    %p249 = scmp.eq.s32.totalorder %s18, 1
    %p250 = por %p248, %p249
    %p251 = scmp.ne.s32.totalorder %s243, %s246
    %p252 = scmp.eq.s32.totalorder %s18, 0
    %p253 = por %p251, %p252
    %p254 = scmp.ne.s32.totalorder %s243, %s246
    %p255 = scmp.eq.s32.totalorder %s23, 1
    %p256 = por %p254, %p255
    %p257 = scmp.ne.s32.totalorder %s246, %s247
    %p258 = scmp.eq.s32.totalorder %s23, 0
    %p259 = por %p257, %p258
    %p260 = scmp.ne.s32.totalorder %s246, %s247
    %p261 = scmp.eq.s32.totalorder %s24, 1
    %p262 = por %p260, %p261
    %p264 = scmp.ne.s32.totalorder %s247, %s263
    %p265 = scmp.eq.s32.totalorder %s24, 0
    %p266 = por %p264, %p265
    %p267 = scmp.le.s32.totalorder 1, %s18
    %p268 = scmp.lt.s32.totalorder %s18, 3
    %p269 = pnand %p267, %p268
    %p270 = pneg %p269
    // Predicated region
    $region9: #{attention_forward.1} parent=5 // pred_check
      _
    $region10: #{attention_forward.1} parent=5 // pred_check_branch
      %272 = sbr.rel (%p269) target = $region12
    $region11: #{attention_forward.1} parent=5 // pred_region
      %s273 = ssub.s32 %s18, 1
      // Predicated region
      $region13: #{attention_forward.1} parent=11 // pred_check
        %p274 = pneg %p65
      $region14: #{attention_forward.1} parent=11 // pred_check_branch
        %276 = sbr.rel (%p274) target = $region16
      $region15: #{attention_forward.1} parent=11 // pred_region
        _
      $region16: #{attention_forward.1} parent=11 // pred_fallthru
        _
      // Predicated region
      $region17: #{attention_forward.1} parent=11 // pred_check
        %p277 = pneg %p86
      $region18: #{attention_forward.1} parent=11 // pred_check_branch
        %279 = sbr.rel (%p277) target = $region20
      $region19: #{attention_forward.1} parent=11 // pred_region
        _
      $region20: #{attention_forward.1} parent=11 // pred_fallthru
        _
      // Predicated region
      $region21: #{attention_forward.1} parent=11 // pred_check
        %p280 = pneg %p107
      $region22: #{attention_forward.1} parent=11 // pred_check_branch
        %282 = sbr.rel (%p280) target = $region24
      $region23: #{attention_forward.1} parent=11 // pred_region
        _
      $region24: #{attention_forward.1} parent=11 // pred_fallthru
        _
      // Predicated region
      $region25: #{attention_forward.1} parent=11 // pred_check
        %p283 = pneg %p128
      $region26: #{attention_forward.1} parent=11 // pred_check_branch
        %285 = sbr.rel (%p283) target = $region28
      $region27: #{attention_forward.1} parent=11 // pred_region
        _
      $region28: #{attention_forward.1} parent=11 // pred_fallthru
        _
      // Predicated region
      $region29: #{attention_forward.1} parent=11 // pred_check
        %p286 = pneg %p149
      $region30: #{attention_forward.1} parent=11 // pred_check_branch
        %288 = sbr.rel (%p286) target = $region32
      $region31: #{attention_forward.1} parent=11 // pred_region
        _
      $region32: #{attention_forward.1} parent=11 // pred_fallthru
        _
      // Predicated region
      $region33: #{attention_forward.1} parent=11 // pred_check
        %p289 = pneg %p170
      $region34: #{attention_forward.1} parent=11 // pred_check_branch
        %291 = sbr.rel (%p289) target = $region36
      $region35: #{attention_forward.1} parent=11 // pred_region
        _
      $region36: #{attention_forward.1} parent=11 // pred_fallthru
        _
      // Predicated region
      $region37: #{attention_forward.1} parent=11 // pred_check
        %p292 = pneg %p191
      $region38: #{attention_forward.1} parent=11 // pred_check_branch
        %294 = sbr.rel (%p292) target = $region40
      $region39: #{attention_forward.1} parent=11 // pred_region
        _
      $region40: #{attention_forward.1} parent=11 // pred_fallthru
        _
      // Predicated region
      $region41: #{attention_forward.1} parent=11 // pred_check
        %p295 = pneg %p212
      $region42: #{attention_forward.1} parent=11 // pred_check_branch
        %297 = sbr.rel (%p295) target = $region44
      $region43: #{attention_forward.1} parent=11 // pred_region
        _
      $region44: #{attention_forward.1} parent=11 // pred_fallthru
        _
      // Predicated region
      $region45: #{attention_forward.1} parent=11 // pred_check
        %p298 = pneg %p233
      $region46: #{attention_forward.1} parent=11 // pred_check_branch
        %300 = sbr.rel (%p298) target = $region48
      $region47: #{attention_forward.1} parent=11 // pred_region
        _
      $region48: #{attention_forward.1} parent=11 // pred_fallthru
        _
    $region12: #{attention_forward.1} parent=5 // pred_fallthru
      _
    %p301 = scmp.lt.s32.totalorder %s18, 2
    // Predicated region
    $region49: #{attention_forward.1} parent=5 // pred_check
      %p302 = pneg %p301
    $region50: #{attention_forward.1} parent=5 // pred_check_branch
      %304 = sbr.rel (%p302) target = $region52
    $region51: #{attention_forward.1} parent=5 // pred_region
      // Predicated region
      $region53: #{attention_forward.1} parent=51 // pred_check
        %p305 = pneg %p38
      $region54: #{attention_forward.1} parent=51 // pred_check_branch
        %307 = sbr.rel (%p305) target = $region56
      $region55: #{attention_forward.1} parent=51 // pred_region
        %p308 = scmp.lt.s32.totalorder %s18, 1
        %s309 = scalar_select %p308, %s18, 1
        %s310 = smul.addr %s309, 4
        %s311 = smul.addr %s310, 8
        %s312 = scalar_lea.vmem %s0, %s311
      $region56: #{attention_forward.1} parent=51 // pred_fallthru
        _
    $region52: #{attention_forward.1} parent=5 // pred_fallthru
      _
    %p313 = scmp.le.s32.totalorder 1, %s18
    %p314 = scmp.lt.s32.totalorder %s18, 3
    %p315 = pnand %p313, %p314
    %p316 = pneg %p315
    // Predicated region
    $region57: #{attention_forward.1} parent=5 // pred_check
      _
    $region58: #{attention_forward.1} parent=5 // pred_check_branch
      %318 = sbr.rel (%p315) target = $region60
    $region59: #{attention_forward.1} parent=5 // pred_region
      %s319 = ssub.s32 %s18, 1
      %p320 = scmp.lt.s32.totalorder %s23, 1
      %s321 = scalar_select %p320, %s23, 1
      %s322 = smul.addr %s321, 4
      %s323 = smul.addr %s322, 8
      %s324 = scalar_lea.vmem %s0, %s323
      %p325 = pneg %p44
      %p326 = pneg %p41
      %p327 = pneg %p65
      %p328 = pneg %p62
      %p329 = pneg %p86
      %p330 = pneg %p83
      %p331 = pneg %p107
      %p332 = pneg %p104
      %p333 = pneg %p128
      %p334 = pneg %p125
      %p335 = pneg %p149
      %p336 = pneg %p146
      %p337 = pneg %p170
      %p338 = pneg %p167
      %p339 = pneg %p191
      %p340 = pneg %p188
      %p341 = pneg %p212
      %p342 = pneg %p209
      %p343 = pneg %p233
      %p344 = pneg %p230
      %p345 = pneg %p259
      %p346 = pneg %p256
      %p347 = scmp.lt.s32.totalorder %s23, 1
      %s348 = scalar_select %p347, %s23, 1
      %s349 = smul.addr %s348, 2
      %s350 = scalar_lea.vmem %s10, %s349
      %p351 = scmp.lt.s32.totalorder %s23, 1
      %s352 = scalar_select %p351, %s23, 1
      %s353 = smul.addr %s352, 4
      %s354 = smul.addr %s353, 8
      %s355 = scalar_lea.vmem %s0, %s354
      %p356 = scmp.lt.s32.totalorder %s23, 1
      %s357 = scalar_select %p356, %s23, 1
      %s358 = smul.addr %s357, 2
      %s359 = scalar_lea.vmem %s10, %s358
      %v361 = vld [vmem:[%s1] sm:$0x3]
      %s362 = scalar_lea.vmem %s1, 2
      %v363 = vld [vmem:[%s362] sm:$0x3]
      %s364 = scalar_lea.vmem %s1, 4
      %v365 = vld [vmem:[%s364] sm:$0x3]
      %s366 = scalar_lea.vmem %s1, 6
      %v367 = vld [vmem:[%s366] sm:$0x3]
      %s368 = scalar_lea.vmem %s1, 8
      %v369 = vld [vmem:[%s368] sm:$0x3]
      %s370 = scalar_lea.vmem %s1, 10
      %v371 = vld [vmem:[%s370] sm:$0x3]
      %s372 = scalar_lea.vmem %s1, 12
      %v373 = vld [vmem:[%s372] sm:$0x3]
      %s374 = scalar_lea.vmem %s1, 14
      %v375 = vld [vmem:[%s374] sm:$0x3]
      %s376 = scalar_lea.vmem %s1, 16
      %v377 = vld [vmem:[%s376] sm:$0x3]
      %v378 = vld [vmem:[%s355] sm:$0xff]
      %v379 = vld [vmem:[%s355 + $0x8] sm:$0xff]
      %v380 = vld [vmem:[%s355 + $0x10] sm:$0xff]
      %v381 = vld [vmem:[%s355 + $0x18] sm:$0xff]
      %382 = vrot.lane.b32.xlu0 %v378, 17
      %v383 = vpop.permute.xlu0 %382
      %384 = vrot.lane.b32.xlu0 %v380, 17
      %v385 = vpop.permute.xlu0 %384
      %386 = vrot.lane.b32.xlu0 %v379, 17
      %v387 = vpop.permute.xlu0 %386
      %388 = vrot.lane.b32.xlu0 %v381, 17
      %v389 = vpop.permute.xlu0 %388
      %v390 = vlaneseq
      %v391 = vand.u32 %v390, 127
      %vm392 = vcmp.lt.s32.totalorder %v391, 17
      %v393 = vsel %vm392, %v383, %v387
      %v394 = vsel %vm392, %v385, %v389
      %v395 = vsel %vm392, %v387, %v383
      %v396 = vsel %vm392, %v389, %v385
      %v398 = vlaneseq
      %v399 = vshrl.u32 %v398, 7
      %v400 = vsub.s32 0, %v399
      %v401 = vrot.slane %v361, %v400
      %v402 = vlaneseq
      %v403 = vshrl.u32 %v402, 7
      %v404 = vsub.s32 1, %v403
      %v405 = vrot.slane %v361, %v404
      %v408 = vmul.f32 %v395, %v401
      %v409 = vmul.f32 %v393, %v405
      %v410 = vmul.f32 %v396, %v401
      %v411 = vmul.f32 %v394, %v405
      %v412 = vpack.c.bf16 %v410, %v408
      %v413 = vpack.c.bf16 %v411, %v409
      %414 = vst [vmem:[#allocation2] sm:$0xff] %v412
      %415 = vst [vmem:[#allocation2 + $0x8] sm:$0xff] %v413
      %416 = vrot.lane.b32.xlu0 %v378, 16
      %v417 = vpop.permute.xlu0 %416
      %418 = vrot.lane.b32.xlu0 %v380, 16
      %v419 = vpop.permute.xlu0 %418
      %420 = vrot.lane.b32.xlu0 %v379, 16
      %v421 = vpop.permute.xlu0 %420
      %422 = vrot.lane.b32.xlu0 %v381, 16
      %v423 = vpop.permute.xlu0 %422
      %vm424 = vcmp.lt.s32.totalorder %v391, 16
      %v425 = vsel %vm424, %v417, %v421
      %v426 = vsel %vm424, %v419, %v423
      %v427 = vsel %vm424, %v421, %v417
      %v428 = vsel %vm424, %v423, %v419
      %v430 = vlaneseq
      %v431 = vshrl.u32 %v430, 7
      %v432 = vsub.s32 0, %v431
      %v433 = vrot.slane %v363, %v432
      %v434 = vlaneseq
      %v435 = vshrl.u32 %v434, 7
      %v436 = vsub.s32 1, %v435
      %v437 = vrot.slane %v363, %v436
      %v440 = vmul.f32 %v427, %v433
      %v441 = vmul.f32 %v425, %v437
      %v442 = vmul.f32 %v428, %v433
      %v443 = vmul.f32 %v426, %v437
      %v444 = vpack.c.bf16 %v442, %v440
      %v445 = vpack.c.bf16 %v443, %v441
      %446 = vst [vmem:[#allocation2 + $0x10] sm:$0xff] %v444
      %447 = vst [vmem:[#allocation2 + $0x18] sm:$0xff] %v445
      %448 = vrot.lane.b32.xlu0 %v378, 15
      %v449 = vpop.permute.xlu0 %448
      %450 = vrot.lane.b32.xlu0 %v380, 15
      %v451 = vpop.permute.xlu0 %450
      %452 = vrot.lane.b32.xlu0 %v379, 15
      %v453 = vpop.permute.xlu0 %452
      %454 = vrot.lane.b32.xlu0 %v381, 15
      %v455 = vpop.permute.xlu0 %454
      %vm456 = vcmp.lt.s32.totalorder %v391, 15
      %v457 = vsel %vm456, %v449, %v453
      %v458 = vsel %vm456, %v451, %v455
      %v459 = vsel %vm456, %v453, %v449
      %v460 = vsel %vm456, %v455, %v451
      %v462 = vlaneseq
      %v463 = vshrl.u32 %v462, 7
      %v464 = vsub.s32 0, %v463
      %v465 = vrot.slane %v365, %v464
      %v466 = vlaneseq
      %v467 = vshrl.u32 %v466, 7
      %v468 = vsub.s32 1, %v467
      %v469 = vrot.slane %v365, %v468
      %v472 = vmul.f32 %v459, %v465
      %v473 = vmul.f32 %v457, %v469
      %v474 = vmul.f32 %v460, %v465
      %v475 = vmul.f32 %v458, %v469
      %v476 = vpack.c.bf16 %v474, %v472
      %v477 = vpack.c.bf16 %v475, %v473
      %478 = vst [vmem:[#allocation2 + $0x20] sm:$0xff] %v476
      %479 = vst [vmem:[#allocation2 + $0x28] sm:$0xff] %v477
      %480 = vrot.lane.b32.xlu0 %v378, 1
      %v481 = vpop.permute.xlu0 %480
      %482 = vrot.lane.b32.xlu0 %v380, 1
      %v483 = vpop.permute.xlu0 %482
      %484 = vrot.lane.b32.xlu0 %v379, 1
      %v485 = vpop.permute.xlu0 %484
      %486 = vrot.lane.b32.xlu0 %v381, 1
      %v487 = vpop.permute.xlu0 %486
      %vm488 = vcmp.lt.s32.totalorder %v391, 1
      %v489 = vsel %vm488, %v481, %v485
      %v490 = vsel %vm488, %v483, %v487
      %v491 = vsel %vm488, %v485, %v481
      %v492 = vsel %vm488, %v487, %v483
      %v494 = vlaneseq
      %v495 = vshrl.u32 %v494, 7
      %v496 = vsub.s32 0, %v495
      %v497 = vrot.slane %v367, %v496
      %v498 = vlaneseq
      %v499 = vshrl.u32 %v498, 7
      %v500 = vsub.s32 1, %v499
      %v501 = vrot.slane %v367, %v500
      %v504 = vmul.f32 %v491, %v497
      %v505 = vmul.f32 %v489, %v501
      %v506 = vmul.f32 %v492, %v497
      %v507 = vmul.f32 %v490, %v501
      %v508 = vpack.c.bf16 %v506, %v504
      %v509 = vpack.c.bf16 %v507, %v505
      %510 = vst [vmem:[#allocation2 + $0x30] sm:$0xff] %v508
      %511 = vst [vmem:[#allocation2 + $0x38] sm:$0xff] %v509
      %v513 = vlaneseq
      %v514 = vshrl.u32 %v513, 7
      %v515 = vsub.s32 0, %v514
      %v516 = vrot.slane %v369, %v515
      %v517 = vlaneseq
      %v518 = vshrl.u32 %v517, 7
      %v519 = vsub.s32 1, %v518
      %v520 = vrot.slane %v369, %v519
      %v523 = vmul.f32 %v378, %v516
      %v524 = vmul.f32 %v379, %v520
      %v525 = vmul.f32 %v380, %v516
      %v526 = vmul.f32 %v381, %v520
      %v527 = vpack.c.bf16 %v525, %v523
      %v528 = vpack.c.bf16 %v526, %v524
      %529 = vst [vmem:[#allocation2 + $0x40] sm:$0xff] %v527
      %530 = vst [vmem:[#allocation2 + $0x48] sm:$0xff] %v528
      %531 = vrot.lane.b32.xlu0 %v378, 127
      %v532 = vpop.permute.xlu0 %531
      %533 = vrot.lane.b32.xlu0 %v380, 127
      %v534 = vpop.permute.xlu0 %533
      %535 = vrot.lane.b32.xlu0 %v379, 127
      %v536 = vpop.permute.xlu0 %535
      %537 = vrot.lane.b32.xlu0 %v381, 127
      %v538 = vpop.permute.xlu0 %537
      %vm539 = vcmp.lt.s32.totalorder %v391, 127
      %v540 = vsel %vm539, %v532, %v536
      %v541 = vsel %vm539, %v534, %v538
      %v542 = vsel %vm539, %v536, %v532
      %v543 = vsel %vm539, %v538, %v534
      %v545 = vlaneseq
      %v546 = vshrl.u32 %v545, 7
      %v547 = vsub.s32 0, %v546
      %v548 = vrot.slane %v371, %v547
      %v549 = vlaneseq
      %v550 = vshrl.u32 %v549, 7
      %v551 = vsub.s32 1, %v550
      %v552 = vrot.slane %v371, %v551
      %v555 = vmul.f32 %v540, %v548
      %v556 = vmul.f32 %v542, %v552
      %v557 = vmul.f32 %v541, %v548
      %v558 = vmul.f32 %v543, %v552
      %v559 = vpack.c.bf16 %v557, %v555
      %v560 = vpack.c.bf16 %v558, %v556
      %561 = vst [vmem:[#allocation2 + $0x50] sm:$0xff] %v559
      %562 = vst [vmem:[#allocation2 + $0x58] sm:$0xff] %v560
      %563 = vrot.lane.b32.xlu0 %v378, 113
      %v564 = vpop.permute.xlu0 %563
      %565 = vrot.lane.b32.xlu0 %v380, 113
      %v566 = vpop.permute.xlu0 %565
      %567 = vrot.lane.b32.xlu0 %v379, 113
      %v568 = vpop.permute.xlu0 %567
      %569 = vrot.lane.b32.xlu0 %v381, 113
      %v570 = vpop.permute.xlu0 %569
      %vm571 = vcmp.lt.s32.totalorder %v391, 113
      %v572 = vsel %vm571, %v564, %v568
      %v573 = vsel %vm571, %v566, %v570
      %v574 = vsel %vm571, %v568, %v564
      %v575 = vsel %vm571, %v570, %v566
      %v577 = vlaneseq
      %v578 = vshrl.u32 %v577, 7
      %v579 = vsub.s32 0, %v578
      %v580 = vrot.slane %v373, %v579
      %v581 = vlaneseq
      %v582 = vshrl.u32 %v581, 7
      %v583 = vsub.s32 1, %v582
      %v584 = vrot.slane %v373, %v583
      %v587 = vmul.f32 %v572, %v580
      %v588 = vmul.f32 %v574, %v584
      %v589 = vmul.f32 %v573, %v580
      %v590 = vmul.f32 %v575, %v584
      %v591 = vpack.c.bf16 %v589, %v587
      %v592 = vpack.c.bf16 %v590, %v588
      %593 = vst [vmem:[#allocation2 + $0x60] sm:$0xff] %v591
      %594 = vst [vmem:[#allocation2 + $0x68] sm:$0xff] %v592
      %595 = vrot.lane.b32.xlu0 %v378, 112
      %v596 = vpop.permute.xlu0 %595
      %597 = vrot.lane.b32.xlu0 %v380, 112
      %v598 = vpop.permute.xlu0 %597
      %599 = vrot.lane.b32.xlu0 %v379, 112
      %v600 = vpop.permute.xlu0 %599
      %601 = vrot.lane.b32.xlu0 %v381, 112
      %v602 = vpop.permute.xlu0 %601
      %vm603 = vcmp.lt.s32.totalorder %v391, 112
      %v604 = vsel %vm603, %v596, %v600
      %v605 = vsel %vm603, %v598, %v602
      %v606 = vsel %vm603, %v600, %v596
      %v607 = vsel %vm603, %v602, %v598
      %v609 = vlaneseq
      %v610 = vshrl.u32 %v609, 7
      %v611 = vsub.s32 0, %v610
      %v612 = vrot.slane %v375, %v611
      %v613 = vlaneseq
      %v614 = vshrl.u32 %v613, 7
      %v615 = vsub.s32 1, %v614
      %v616 = vrot.slane %v375, %v615
      %v619 = vmul.f32 %v604, %v612
      %v620 = vmul.f32 %v606, %v616
      %v621 = vmul.f32 %v605, %v612
      %v622 = vmul.f32 %v607, %v616
      %v623 = vpack.c.bf16 %v621, %v619
      %v624 = vpack.c.bf16 %v622, %v620
      %625 = vst [vmem:[#allocation2 + $0x70] sm:$0xff] %v623
      %626 = vst [vmem:[#allocation2 + $0x78] sm:$0xff] %v624
      %627 = vrot.lane.b32.xlu0 %v378, 111
      %v628 = vpop.permute.xlu0 %627
      %629 = vrot.lane.b32.xlu0 %v380, 111
      %v630 = vpop.permute.xlu0 %629
      %631 = vrot.lane.b32.xlu0 %v379, 111
      %v632 = vpop.permute.xlu0 %631
      %633 = vrot.lane.b32.xlu0 %v381, 111
      %v634 = vpop.permute.xlu0 %633
      %vm635 = vcmp.lt.s32.totalorder %v391, 111
      %v636 = vsel %vm635, %v628, %v632
      %v637 = vsel %vm635, %v630, %v634
      %v638 = vsel %vm635, %v632, %v628
      %v639 = vsel %vm635, %v634, %v630
      %v641 = vlaneseq
      %v642 = vshrl.u32 %v641, 7
      %v643 = vsub.s32 0, %v642
      %v644 = vrot.slane %v377, %v643
      %v645 = vlaneseq
      %v646 = vshrl.u32 %v645, 7
      %v647 = vsub.s32 1, %v646
      %v648 = vrot.slane %v377, %v647
      %v651 = vmul.f32 %v636, %v644
      %v652 = vmul.f32 %v638, %v648
      %v653 = vmul.f32 %v637, %v644
      %v654 = vmul.f32 %v639, %v648
      %v655 = vpack.c.bf16 %v653, %v651
      %v656 = vpack.c.bf16 %v654, %v652
      %657 = vst [vmem:[#allocation2 + $0x80] sm:$0xff] %v655
      %658 = vst [vmem:[#allocation2 + $0x88] sm:$0xff] %v656
      %v659 = vld [vmem:[%s2] sm:$0xff]
      %v660 = vld [vmem:[%s2 + $0x8] sm:$0xff]
      %v661 = vld [vmem:[%s2 + $0x10] sm:$0xff]
      %v662 = vld [vmem:[%s2 + $0x18] sm:$0xff]
      %v663 = vld [vmem:[%s2 + $0x20] sm:$0xff]
      %v664 = vld [vmem:[%s2 + $0x28] sm:$0xff]
      %v665 = vld [vmem:[%s2 + $0x30] sm:$0xff]
      %v666 = vld [vmem:[%s2 + $0x38] sm:$0xff]
      %v667 = vld [vmem:[#allocation2] sm:$0xff]
      %v668 = vld [vmem:[#allocation2 + $0x8] sm:$0xff]
      %v669 = vld [vmem:[#allocation2 + $0x10] sm:$0xff]
      %v670 = vld [vmem:[#allocation2 + $0x18] sm:$0xff]
      %v671 = vld [vmem:[#allocation2 + $0x20] sm:$0xff]
      %v672 = vld [vmem:[#allocation2 + $0x28] sm:$0xff]
      %v673 = vld [vmem:[#allocation2 + $0x30] sm:$0xff]
      %v674 = vld [vmem:[#allocation2 + $0x38] sm:$0xff]
      %v675 = vld [vmem:[#allocation2 + $0x40] sm:$0xff]
      %v676 = vld [vmem:[#allocation2 + $0x48] sm:$0xff]
      %v677 = vld [vmem:[#allocation2 + $0x50] sm:$0xff]
      %v678 = vld [vmem:[#allocation2 + $0x58] sm:$0xff]
      %v679 = vld [vmem:[#allocation2 + $0x60] sm:$0xff]
      %v680 = vld [vmem:[#allocation2 + $0x68] sm:$0xff]
      %v681 = vld [vmem:[#allocation2 + $0x70] sm:$0xff]
      %v682 = vld [vmem:[#allocation2 + $0x78] sm:$0xff]
      %v683 = vld [vmem:[#allocation2 + $0x80] sm:$0xff]
      %v684 = vld [vmem:[#allocation2 + $0x88] sm:$0xff]
      %v693 = vunpack.c.l.b16 %v659
      %v694 = vunpack.c.h.b16 %v659
      %v695 = vunpack.c.l.b16 %v660
      %v696 = vunpack.c.h.b16 %v660
      %v697 = vunpack.c.l.b16 %v661
      %v698 = vunpack.c.h.b16 %v661
      %v699 = vunpack.c.l.b16 %v662
      %v700 = vunpack.c.h.b16 %v662
      %v701 = vunpack.c.l.b16 %v663
      %v702 = vunpack.c.h.b16 %v663
      %v703 = vunpack.c.l.b16 %v664
      %v704 = vunpack.c.h.b16 %v664
      %v705 = vunpack.c.l.b16 %v665
      %v706 = vunpack.c.h.b16 %v665
      %v707 = vunpack.c.l.b16 %v666
      %v708 = vunpack.c.h.b16 %v666
      %v709 = vpack.c.b16 %v695, %v693
      %v710 = vpack.c.b16 %v696, %v694
      %v711 = vpack.c.b16 %v699, %v697
      %v712 = vpack.c.b16 %v700, %v698
      %v713 = vpack.c.b16 %v703, %v701
      %v714 = vpack.c.b16 %v704, %v702
      %v715 = vpack.c.b16 %v707, %v705
      %v716 = vpack.c.b16 %v708, %v706
      %vm721 = vcmask 130048
      %v723 = vsel %vm721, %v710, 0
      %v726 = vsel %vm721, %v712, 0
      %v729 = vsel %vm721, %v714, 0
      %v732 = vsel %vm721, %v716, 0
      %734 = vmatprep.subr.bf16.mxu0 %v668
      %735 = vmatpush1.bf16.msra.mxu0 %v667
      %736 = vmatprep.subr.bf16.mxu0 %v670
      %737 = vmatpush1.bf16.msra.mxu0 %v669
      %738 = vmatprep.subr.bf16.mxu0 %v672
      %739 = vmatpush1.bf16.msra.mxu0 %v671
      %740 = vmatprep.subr.bf16.mxu0 %v674
      %741 = vmatpush1.bf16.msra.mxu0 %v673
      %742 = vmatprep.subr.bf16.mxu0 %v676
      %743 = vmatpush1.bf16.msra.mxu0 %v675
      %744 = vmatprep.subr.bf16.mxu0 %v678
      %745 = vmatpush1.bf16.msra.mxu0 %v677
      %746 = vmatprep.subr.bf16.mxu0 %v680
      %747 = vmatpush1.bf16.msra.mxu0 %v679
      %748 = vmatprep.subr.bf16.mxu0 %v682
      %749 = vmatpush1.bf16.msra.mxu0 %v681
      %750 = vmatprep.subr.bf16.mxu0 %v684
      %751 = vmatpush1.bf16.msra.mxu0 %v683
      %752 = vmatprep.subr.bf16.mxu0 0
      %753 = vmatpush1.bf16.msra.mxu0 0
      %754 = vmatprep.subr.bf16.mxu0 0
      %755 = vmatpush1.bf16.msra.mxu0 0
      %756 = vmatprep.subr.bf16.mxu0 0
      %757 = vmatpush1.bf16.msra.mxu0 0
      %758 = vmatprep.subr.bf16.mxu0 0
      %759 = vmatpush1.bf16.msra.mxu0 0
      %760 = vmatprep.subr.bf16.mxu0 0
      %761 = vmatpush1.bf16.msra.mxu0 0
      %762 = vmatprep.subr.bf16.mxu0 0
      %763 = vmatpush1.bf16.msra.mxu0 0
      %764 = vmatprep.subr.bf16.mxu0 0
      %765 = vmatpush1.bf16.msra.mxu0 0
      %766 = vmatprep.mubr.bf16.mxu0 %v723
      %767 = vmatmul.mubr.bf16.gmra.mrb[0].mxu0 %v709
      %v768 = vpop.f32.mrb[0].mxu0
      %v769 = vadd.f32 0.0, %v768
      %v770 = vpop.f32.mrb[0].mxu0
      %v771 = vadd.f32 0.0, %v770
      %v772 = vpop.f32.mrb[0].mxu0
      %v773 = vadd.f32 0.0, %v772
      %v774 = vpop.f32.mrb[0].mxu0
      %v775 = vadd.f32 0.0, %v774
      %776 = vmatprep.mubr.bf16.mxu0 %v726
      %777 = vmatmul.mubr.bf16.gmra.mrb[0].mxu0 %v711
      %v778 = vpop.f32.mrb[0].mxu0
      %v779 = vadd.f32 0.0, %v778
      %v780 = vpop.f32.mrb[0].mxu0
      %v781 = vadd.f32 0.0, %v780
      %v782 = vpop.f32.mrb[0].mxu0
      %v783 = vadd.f32 0.0, %v782
      %v784 = vpop.f32.mrb[0].mxu0
      %v785 = vadd.f32 0.0, %v784
      %786 = vmatprep.mubr.bf16.mxu0 %v729
      %787 = vmatmul.mubr.bf16.gmra.mrb[0].mxu0 %v713
      %v788 = vpop.f32.mrb[0].mxu0
      %v789 = vadd.f32 0.0, %v788
      %v790 = vpop.f32.mrb[0].mxu0
      %v791 = vadd.f32 0.0, %v790
      %v792 = vpop.f32.mrb[0].mxu0
      %v793 = vadd.f32 0.0, %v792
      %v794 = vpop.f32.mrb[0].mxu0
      %v795 = vadd.f32 0.0, %v794
      %796 = vmatprep.mubr.bf16.mxu0 %v732
      %797 = vmatmul.mubr.bf16.gmra.mrb[0].mxu0 %v715
      %v798 = vpop.f32.mrb[0].mxu0
      %v799 = vadd.f32 0.0, %v798
      %v800 = vpop.f32.mrb[0].mxu0
      %v801 = vadd.f32 0.0, %v800
      %v802 = vpop.f32.mrb[0].mxu0
      %v803 = vadd.f32 0.0, %v802
      %v804 = vpop.f32.mrb[0].mxu0
      %v805 = vadd.f32 0.0, %v804
      %806 = vdwg.mxu0
      %v807 = vld [vmem:[%s3] sm:$0xff]
      %v808 = vld [vmem:[%s3 + $0x8] sm:$0xff]
      %v809 = vld [vmem:[%s3 + $0x10] sm:$0xff]
      %v810 = vld [vmem:[%s3 + $0x18] sm:$0xff]
      %v811 = vld [vmem:[%s3 + $0x20] sm:$0xff]
      %v812 = vld [vmem:[%s3 + $0x28] sm:$0xff]
      %v813 = vld [vmem:[%s3 + $0x30] sm:$0xff]
      %v814 = vld [vmem:[%s3 + $0x38] sm:$0xff]
      %816 = vset.pattern.permute.xlu0 0
      %817 = vperm.xlu0 %816, %v807
      %v818 = vpop.permute.xlu0 %817
      %821 = vset.pattern.permute.xlu0 0
      %822 = vperm.xlu0 %821, %v808
      %v823 = vpop.permute.xlu0 %822
      %826 = vset.pattern.permute.xlu0 0
      %827 = vperm.xlu0 %826, %v809
      %v828 = vpop.permute.xlu0 %827
      %831 = vset.pattern.permute.xlu0 0
      %832 = vperm.xlu0 %831, %v810
      %v833 = vpop.permute.xlu0 %832
      %836 = vset.pattern.permute.xlu0 0
      %837 = vperm.xlu0 %836, %v811
      %v838 = vpop.permute.xlu0 %837
      %841 = vset.pattern.permute.xlu0 0
      %842 = vperm.xlu0 %841, %v812
      %v843 = vpop.permute.xlu0 %842
      %846 = vset.pattern.permute.xlu0 0
      %847 = vperm.xlu0 %846, %v813
      %v848 = vpop.permute.xlu0 %847
      %851 = vset.pattern.permute.xlu0 0
      %852 = vperm.xlu0 %851, %v814
      %v853 = vpop.permute.xlu0 %852
      %v855 = vmul.f32 %v769, %v818
      %v856 = vmul.f32 %v771, %v818
      %v857 = vmul.f32 %v773, %v823
      %v858 = vmul.f32 %v775, %v823
      %v859 = vmul.f32 %v779, %v828
      %v860 = vmul.f32 %v781, %v828
      %v861 = vmul.f32 %v783, %v833
      %v862 = vmul.f32 %v785, %v833
      %v863 = vmul.f32 %v789, %v838
      %v864 = vmul.f32 %v791, %v838
      %v865 = vmul.f32 %v793, %v843
      %v866 = vmul.f32 %v795, %v843
      %v867 = vmul.f32 %v799, %v848
      %v868 = vmul.f32 %v801, %v848
      %v869 = vmul.f32 %v803, %v853
      %v870 = vmul.f32 %v805, %v853
      %v871 = vld [vmem:[%s4] sm:$0xff]
      %v872 = vld [vmem:[%s4 + $0x8] sm:$0xff]
      %v873 = vld [vmem:[%s4 + $0x10] sm:$0xff]
      %v874 = vld [vmem:[%s4 + $0x18] sm:$0xff]
      %v875 = vld [vmem:[%s4 + $0x20] sm:$0xff]
      %v876 = vld [vmem:[%s4 + $0x28] sm:$0xff]
      %v877 = vld [vmem:[%s4 + $0x30] sm:$0xff]
      %v878 = vld [vmem:[%s4 + $0x38] sm:$0xff]
      %880 = vset.pattern.permute.xlu0 0
      %881 = vperm.xlu0 %880, %v871
      %v882 = vpop.permute.xlu0 %881
      %885 = vset.pattern.permute.xlu0 0
      %886 = vperm.xlu0 %885, %v872
      %v887 = vpop.permute.xlu0 %886
      %890 = vset.pattern.permute.xlu0 0
      %891 = vperm.xlu0 %890, %v873
      %v892 = vpop.permute.xlu0 %891
      %895 = vset.pattern.permute.xlu0 0
      %896 = vperm.xlu0 %895, %v874
      %v897 = vpop.permute.xlu0 %896
      %900 = vset.pattern.permute.xlu0 0
      %901 = vperm.xlu0 %900, %v875
      %v902 = vpop.permute.xlu0 %901
      %905 = vset.pattern.permute.xlu0 0
      %906 = vperm.xlu0 %905, %v876
      %v907 = vpop.permute.xlu0 %906
      %910 = vset.pattern.permute.xlu0 0
      %911 = vperm.xlu0 %910, %v877
      %v912 = vpop.permute.xlu0 %911
      %915 = vset.pattern.permute.xlu0 0
      %916 = vperm.xlu0 %915, %v878
      %v917 = vpop.permute.xlu0 %916
      %v919 = vadd.f32 %v855, %v882
      %v920 = vadd.f32 %v856, %v882
      %v921 = vadd.f32 %v857, %v887
      %v922 = vadd.f32 %v858, %v887
      %v923 = vadd.f32 %v859, %v892
      %v924 = vadd.f32 %v860, %v892
      %v925 = vadd.f32 %v861, %v897
      %v926 = vadd.f32 %v862, %v897
      %v927 = vadd.f32 %v863, %v902
      %v928 = vadd.f32 %v864, %v902
      %v929 = vadd.f32 %v865, %v907
      %v930 = vadd.f32 %v866, %v907
      %v931 = vadd.f32 %v867, %v912
      %v932 = vadd.f32 %v868, %v912
      %v933 = vadd.f32 %v869, %v917
      %v934 = vadd.f32 %v870, %v917
      %v935 = vmax.f32 %v919, 0.0
      %v936 = vmax.f32 %v920, 0.0
      %v937 = vmax.f32 %v921, 0.0
      %v938 = vmax.f32 %v922, 0.0
      %v939 = vmax.f32 %v923, 0.0
      %v940 = vmax.f32 %v924, 0.0
      %v941 = vmax.f32 %v925, 0.0
      %v942 = vmax.f32 %v926, 0.0
      %v943 = vmax.f32 %v927, 0.0
      %v944 = vmax.f32 %v928, 0.0
      %v945 = vmax.f32 %v929, 0.0
      %v946 = vmax.f32 %v930, 0.0
      %v947 = vmax.f32 %v931, 0.0
      %v948 = vmax.f32 %v932, 0.0
      %v949 = vmax.f32 %v933, 0.0
      %v950 = vmax.f32 %v934, 0.0
      %v951 = vld [vmem:[%s5] sm:$0xf]
      %v952 = vld [vmem:[%s5 + $0x4] sm:$0xf]
      %v953 = vld [vmem:[%s5 + $0x8] sm:$0xf]
      %v954 = vld [vmem:[%s5 + $0xc] sm:$0xf]
      %955 = vrot.lane.b32.xlu0 %v935, 17
      %v956 = vpop.permute.xlu0 %955
      %957 = vrot.lane.b32.xlu0 %v937, 17
      %v958 = vpop.permute.xlu0 %957
      %959 = vrot.lane.b32.xlu0 %v939, 17
      %v960 = vpop.permute.xlu0 %959
      %961 = vrot.lane.b32.xlu0 %v941, 17
      %v962 = vpop.permute.xlu0 %961
      %963 = vrot.lane.b32.xlu0 %v943, 17
      %v964 = vpop.permute.xlu0 %963
      %965 = vrot.lane.b32.xlu0 %v945, 17
      %v966 = vpop.permute.xlu0 %965
      %967 = vrot.lane.b32.xlu0 %v947, 17
      %v968 = vpop.permute.xlu0 %967
      %969 = vrot.lane.b32.xlu0 %v949, 17
      %v970 = vpop.permute.xlu0 %969
      %971 = vrot.lane.b32.xlu0 %v936, 17
      %v972 = vpop.permute.xlu0 %971
      %973 = vrot.lane.b32.xlu0 %v938, 17
      %v974 = vpop.permute.xlu0 %973
      %975 = vrot.lane.b32.xlu0 %v940, 17
      %v976 = vpop.permute.xlu0 %975
      %977 = vrot.lane.b32.xlu0 %v942, 17
      %v978 = vpop.permute.xlu0 %977
      %979 = vrot.lane.b32.xlu0 %v944, 17
      %v980 = vpop.permute.xlu0 %979
      %981 = vrot.lane.b32.xlu0 %v946, 17
      %v982 = vpop.permute.xlu0 %981
      %983 = vrot.lane.b32.xlu0 %v948, 17
      %v984 = vpop.permute.xlu0 %983
      %985 = vrot.lane.b32.xlu0 %v950, 17
      %v986 = vpop.permute.xlu0 %985
      %v987 = vsel %vm392, %v956, %v972
      %v988 = vsel %vm392, %v958, %v974
      %v989 = vsel %vm392, %v960, %v976
      %v990 = vsel %vm392, %v962, %v978
      %v991 = vsel %vm392, %v964, %v980
      %v992 = vsel %vm392, %v966, %v982
      %v993 = vsel %vm392, %v968, %v984
      %v994 = vsel %vm392, %v970, %v986
      %v995 = vsel %vm392, %v972, %v956
      %v996 = vsel %vm392, %v974, %v958
      %v997 = vsel %vm392, %v976, %v960
      %v998 = vsel %vm392, %v978, %v962
      %v999 = vsel %vm392, %v980, %v964
      %v1000 = vsel %vm392, %v982, %v966
      %v1001 = vsel %vm392, %v984, %v968
      %v1002 = vsel %vm392, %v986, %v970
      %v1003 = vmul.f32 %v995, %v401
      %v1004 = vmul.f32 %v987, %v405
      %v1005 = vmul.f32 %v996, %v401
      %v1006 = vmul.f32 %v988, %v405
      %v1007 = vmul.f32 %v997, %v401
      %v1008 = vmul.f32 %v989, %v405
      %v1009 = vmul.f32 %v998, %v401
      %v1010 = vmul.f32 %v990, %v405
      %v1011 = vmul.f32 %v999, %v401
      %v1012 = vmul.f32 %v991, %v405
      %v1013 = vmul.f32 %v1000, %v401
      %v1014 = vmul.f32 %v992, %v405
      %v1015 = vmul.f32 %v1001, %v401
      %v1016 = vmul.f32 %v993, %v405
      %v1017 = vmul.f32 %v1002, %v401
      %v1018 = vmul.f32 %v994, %v405
      %v1019 = vpack.c.bf16 %v1005, %v1003
      %v1020 = vpack.c.bf16 %v1006, %v1004
      %v1021 = vpack.c.bf16 %v1009, %v1007
      %v1022 = vpack.c.bf16 %v1010, %v1008
      %v1023 = vpack.c.bf16 %v1013, %v1011
      %v1024 = vpack.c.bf16 %v1014, %v1012
      %v1025 = vpack.c.bf16 %v1017, %v1015
      %v1026 = vpack.c.bf16 %v1018, %v1016
      %s1027 = scalar_lea.vmem %s5, 16
      %v1028 = vld [vmem:[%s1027] sm:$0xf]
      %v1029 = vld [vmem:[%s1027 + $0x4] sm:$0xf]
      %v1030 = vld [vmem:[%s1027 + $0x8] sm:$0xf]
      %v1031 = vld [vmem:[%s1027 + $0xc] sm:$0xf]
      %1032 = vrot.lane.b32.xlu0 %v935, 16
      %v1033 = vpop.permute.xlu0 %1032
      %1034 = vrot.lane.b32.xlu0 %v937, 16
      %v1035 = vpop.permute.xlu0 %1034
      %1036 = vrot.lane.b32.xlu0 %v939, 16
      %v1037 = vpop.permute.xlu0 %1036
      %1038 = vrot.lane.b32.xlu0 %v941, 16
      %v1039 = vpop.permute.xlu0 %1038
      %1040 = vrot.lane.b32.xlu0 %v943, 16
      %v1041 = vpop.permute.xlu0 %1040
      %1042 = vrot.lane.b32.xlu0 %v945, 16
      %v1043 = vpop.permute.xlu0 %1042
      %1044 = vrot.lane.b32.xlu0 %v947, 16
      %v1045 = vpop.permute.xlu0 %1044
      %1046 = vrot.lane.b32.xlu0 %v949, 16
      %v1047 = vpop.permute.xlu0 %1046
      %1048 = vrot.lane.b32.xlu0 %v936, 16
      %v1049 = vpop.permute.xlu0 %1048
      %1050 = vrot.lane.b32.xlu0 %v938, 16
      %v1051 = vpop.permute.xlu0 %1050
      %1052 = vrot.lane.b32.xlu0 %v940, 16
      %v1053 = vpop.permute.xlu0 %1052
      %1054 = vrot.lane.b32.xlu0 %v942, 16
      %v1055 = vpop.permute.xlu0 %1054
      %1056 = vrot.lane.b32.xlu0 %v944, 16
      %v1057 = vpop.permute.xlu0 %1056
      %1058 = vrot.lane.b32.xlu0 %v946, 16
      %v1059 = vpop.permute.xlu0 %1058
      %1060 = vrot.lane.b32.xlu0 %v948, 16
      %v1061 = vpop.permute.xlu0 %1060
      %1062 = vrot.lane.b32.xlu0 %v950, 16
      %v1063 = vpop.permute.xlu0 %1062
      %v1064 = vsel %vm424, %v1033, %v1049
      %v1065 = vsel %vm424, %v1035, %v1051
      %v1066 = vsel %vm424, %v1037, %v1053
      %v1067 = vsel %vm424, %v1039, %v1055
      %v1068 = vsel %vm424, %v1041, %v1057
      %v1069 = vsel %vm424, %v1043, %v1059
      %v1070 = vsel %vm424, %v1045, %v1061
      %v1071 = vsel %vm424, %v1047, %v1063
      %v1072 = vsel %vm424, %v1049, %v1033
      %v1073 = vsel %vm424, %v1051, %v1035
      %v1074 = vsel %vm424, %v1053, %v1037
      %v1075 = vsel %vm424, %v1055, %v1039
      %v1076 = vsel %vm424, %v1057, %v1041
      %v1077 = vsel %vm424, %v1059, %v1043
      %v1078 = vsel %vm424, %v1061, %v1045
      %v1079 = vsel %vm424, %v1063, %v1047
      %v1080 = vmul.f32 %v1072, %v433
      %v1081 = vmul.f32 %v1064, %v437
      %v1082 = vmul.f32 %v1073, %v433
      %v1083 = vmul.f32 %v1065, %v437
      %v1084 = vmul.f32 %v1074, %v433
      %v1085 = vmul.f32 %v1066, %v437
      %v1086 = vmul.f32 %v1075, %v433
      %v1087 = vmul.f32 %v1067, %v437
      %v1088 = vmul.f32 %v1076, %v433
      %v1089 = vmul.f32 %v1068, %v437
      %v1090 = vmul.f32 %v1077, %v433
      %v1091 = vmul.f32 %v1069, %v437
      %v1092 = vmul.f32 %v1078, %v433
      %v1093 = vmul.f32 %v1070, %v437
      %v1094 = vmul.f32 %v1079, %v433
      %v1095 = vmul.f32 %v1071, %v437
      %v1096 = vpack.c.bf16 %v1082, %v1080
      %v1097 = vpack.c.bf16 %v1083, %v1081
      %v1098 = vpack.c.bf16 %v1086, %v1084
      %v1099 = vpack.c.bf16 %v1087, %v1085
      %v1100 = vpack.c.bf16 %v1090, %v1088
      %v1101 = vpack.c.bf16 %v1091, %v1089
      %v1102 = vpack.c.bf16 %v1094, %v1092
      %v1103 = vpack.c.bf16 %v1095, %v1093
      %v1108 = vunpack.c.l.b16 %v1028
      %v1109 = vunpack.c.l.b16 %v1029
      %v1110 = vunpack.c.l.b16 %v1030
      %v1111 = vunpack.c.l.b16 %v1031
      %v1112 = vpack.c.b16 %v1109, %v1108
      %v1113 = vpack.c.b16 %v1111, %v1110
      %vm1114 = vcmask 523264
      %v1116 = vsel %vm1114, %v1112, 0
      %v1119 = vsel %vm1114, %v1113, 0
      %1121 = vmatprep.subr.bf16.mxu0 %v1097
      %1122 = vmatpush1.bf16.msra.mxu0 %v1096
      %1123 = vmatprep.subr.bf16.mxu0 %v1099
      %1124 = vmatpush1.bf16.msra.mxu0 %v1098
      %1125 = vmatprep.subr.bf16.mxu0 %v1101
      %1126 = vmatpush1.bf16.msra.mxu0 %v1100
      %1127 = vmatprep.subr.bf16.mxu0 %v1103
      %1128 = vmatpush1.bf16.msra.mxu0 %v1102
      %1129 = vmatprep.subr.bf16.mxu0 0
      %1130 = vmatpush1.bf16.msra.mxu0 0
      %1131 = vmatprep.subr.bf16.mxu0 0
      %1132 = vmatpush1.bf16.msra.mxu0 0
      %1133 = vmatprep.subr.bf16.mxu0 0
      %1134 = vmatpush1.bf16.msra.mxu0 0
      %1135 = vmatprep.subr.bf16.mxu0 0
      %1136 = vmatpush1.bf16.msra.mxu0 0
      %1137 = vmatprep.subr.bf16.mxu0 0
      %1138 = vmatpush1.bf16.msra.mxu0 0
      %1139 = vmatprep.subr.bf16.mxu0 0
      %1140 = vmatpush1.bf16.msra.mxu0 0
      %1141 = vmatprep.subr.bf16.mxu0 0
      %1142 = vmatpush1.bf16.msra.mxu0 0
      %1143 = vmatprep.subr.bf16.mxu0 0
      %1144 = vmatpush1.bf16.msra.mxu0 0
      %1145 = vmatprep.subr.bf16.mxu0 0
      %1146 = vmatpush1.bf16.msra.mxu0 0
      %1147 = vmatprep.subr.bf16.mxu0 0
      %1148 = vmatpush1.bf16.msra.mxu0 0
      %1149 = vmatprep.subr.bf16.mxu0 0
      %1150 = vmatpush1.bf16.msra.mxu0 0
      %1151 = vmatprep.subr.bf16.mxu0 0
      %1152 = vmatpush1.bf16.msra.mxu0 0
      %1153 = vmatprep.mubr.bf16.mxu0 0
      %1154 = vmatmul.mubr.bf16.gmra.mrb[0].mxu0 %v1116
      %v1155 = vpop.f32.mrb[0].mxu0
      %v1156 = vadd.f32 0.0, %v1155
      %v1157 = vpop.f32.mrb[0].mxu0
      %v1158 = vadd.f32 0.0, %v1157
      %v1159 = vpop.f32.mrb[0].mxu0
      %v1160 = vadd.f32 0.0, %v1159
      %v1161 = vpop.f32.mrb[0].mxu0
      %v1162 = vadd.f32 0.0, %v1161
      %1163 = vmatprep.mubr.bf16.mxu0 0
      %1164 = vmatmul.mubr.bf16.gmra.mrb[0].mxu0 %v1119
      %v1165 = vpop.f32.mrb[0].mxu0
      %v1166 = vadd.f32 0.0, %v1165
      %v1167 = vpop.f32.mrb[0].mxu0
      %v1168 = vadd.f32 0.0, %v1167
      %v1169 = vpop.f32.mrb[0].mxu0
      %v1170 = vadd.f32 0.0, %v1169
      %v1171 = vpop.f32.mrb[0].mxu0
      %v1172 = vadd.f32 0.0, %v1171
      %1173 = vdwg.mxu0
      %v1178 = vunpack.c.l.b16 %v951
      %v1179 = vunpack.c.l.b16 %v952
      %v1180 = vunpack.c.l.b16 %v953
      %v1181 = vunpack.c.l.b16 %v954
      %v1182 = vpack.c.b16 %v1179, %v1178
      %v1183 = vpack.c.b16 %v1181, %v1180
      %v1185 = vsel %vm1114, %v1182, 0
      %v1188 = vsel %vm1114, %v1183, 0
      %1190 = vmatprep.subr.bf16.mxu0 %v1020
      %1191 = vmatpush1.bf16.msra.mxu0 %v1019
      %1192 = vmatprep.subr.bf16.mxu0 %v1022
      %1193 = vmatpush1.bf16.msra.mxu0 %v1021
      %1194 = vmatprep.subr.bf16.mxu0 %v1024
      %1195 = vmatpush1.bf16.msra.mxu0 %v1023
      %1196 = vmatprep.subr.bf16.mxu0 %v1026
      %1197 = vmatpush1.bf16.msra.mxu0 %v1025
      %1198 = vmatprep.subr.bf16.mxu0 0
      %1199 = vmatpush1.bf16.msra.mxu0 0
      %1200 = vmatprep.subr.bf16.mxu0 0
      %1201 = vmatpush1.bf16.msra.mxu0 0
      %1202 = vmatprep.subr.bf16.mxu0 0
      %1203 = vmatpush1.bf16.msra.mxu0 0
      %1204 = vmatprep.subr.bf16.mxu0 0
      %1205 = vmatpush1.bf16.msra.mxu0 0
      %1206 = vmatprep.subr.bf16.mxu0 0
      %1207 = vmatpush1.bf16.msra.mxu0 0
      %1208 = vmatprep.subr.bf16.mxu0 0
      %1209 = vmatpush1.bf16.msra.mxu0 0
      %1210 = vmatprep.subr.bf16.mxu0 0
      %1211 = vmatpush1.bf16.msra.mxu0 0
      %1212 = vmatprep.subr.bf16.mxu0 0
      %1213 = vmatpush1.bf16.msra.mxu0 0
      %1214 = vmatprep.subr.bf16.mxu0 0
      %1215 = vmatpush1.bf16.msra.mxu0 0
      %1216 = vmatprep.subr.bf16.mxu0 0
      %1217 = vmatpush1.bf16.msra.mxu0 0
      %1218 = vmatprep.subr.bf16.mxu0 0
      %1219 = vmatpush1.bf16.msra.mxu0 0
      %1220 = vmatprep.subr.bf16.mxu0 0
      %1221 = vmatpush1.bf16.msra.mxu0 0
      %1222 = vmatprep.mubr.bf16.mxu0 0
      %1223 = vmatmul.mubr.bf16.gmra.mrb[0].mxu0 %v1185
      %v1224 = vpop.f32.mrb[0].mxu0
      %v1225 = vadd.f32 %v1156, %v1224
      %v1226 = vpop.f32.mrb[0].mxu0
      %v1227 = vadd.f32 %v1158, %v1226
      %v1228 = vpop.f32.mrb[0].mxu0
      %v1229 = vadd.f32 %v1160, %v1228
      %v1230 = vpop.f32.mrb[0].mxu0
      %v1231 = vadd.f32 %v1162, %v1230
      %1232 = vmatprep.mubr.bf16.mxu0 0
      %1233 = vmatmul.mubr.bf16.gmra.mrb[0].mxu0 %v1188
      %v1234 = vpop.f32.mrb[0].mxu0
      %v1235 = vadd.f32 %v1166, %v1234
      %v1236 = vpop.f32.mrb[0].mxu0
      %v1237 = vadd.f32 %v1168, %v1236
      %v1238 = vpop.f32.mrb[0].mxu0
      %v1239 = vadd.f32 %v1170, %v1238
      %v1240 = vpop.f32.mrb[0].mxu0
      %v1241 = vadd.f32 %v1172, %v1240
      %1242 = vdwg.mxu0
      %s1243 = scalar_lea.vmem %s5, 32
      %v1244 = vld [vmem:[%s1243] sm:$0xf]
      %v1245 = vld [vmem:[%s1243 + $0x4] sm:$0xf]
      %v1246 = vld [vmem:[%s1243 + $0x8] sm:$0xf]
      %v1247 = vld [vmem:[%s1243 + $0xc] sm:$0xf]
      %1248 = vrot.lane.b32.xlu0 %v935, 15
      %v1249 = vpop.permute.xlu0 %1248
      %1250 = vrot.lane.b32.xlu0 %v937, 15
      %v1251 = vpop.permute.xlu0 %1250
      %1252 = vrot.lane.b32.xlu0 %v939, 15
      %v1253 = vpop.permute.xlu0 %1252
      %1254 = vrot.lane.b32.xlu0 %v941, 15
      %v1255 = vpop.permute.xlu0 %1254
      %1256 = vrot.lane.b32.xlu0 %v943, 15
      %v1257 = vpop.permute.xlu0 %1256
      %1258 = vrot.lane.b32.xlu0 %v945, 15
      %v1259 = vpop.permute.xlu0 %1258
      %1260 = vrot.lane.b32.xlu0 %v947, 15
      %v1261 = vpop.permute.xlu0 %1260
      %1262 = vrot.lane.b32.xlu0 %v949, 15
      %v1263 = vpop.permute.xlu0 %1262
      %1264 = vrot.lane.b32.xlu0 %v936, 15
      %v1265 = vpop.permute.xlu0 %1264
      %1266 = vrot.lane.b32.xlu0 %v938, 15
      %v1267 = vpop.permute.xlu0 %1266
      %1268 = vrot.lane.b32.xlu0 %v940, 15
      %v1269 = vpop.permute.xlu0 %1268
      %1270 = vrot.lane.b32.xlu0 %v942, 15
      %v1271 = vpop.permute.xlu0 %1270
      %1272 = vrot.lane.b32.xlu0 %v944, 15
      %v1273 = vpop.permute.xlu0 %1272
      %1274 = vrot.lane.b32.xlu0 %v946, 15
      %v1275 = vpop.permute.xlu0 %1274
      %1276 = vrot.lane.b32.xlu0 %v948, 15
      %v1277 = vpop.permute.xlu0 %1276
      %1278 = vrot.lane.b32.xlu0 %v950, 15
      %v1279 = vpop.permute.xlu0 %1278
      %v1280 = vsel %vm456, %v1249, %v1265
      %v1281 = vsel %vm456, %v1251, %v1267
      %v1282 = vsel %vm456, %v1253, %v1269
      %v1283 = vsel %vm456, %v1255, %v1271
      %v1284 = vsel %vm456, %v1257, %v1273
      %v1285 = vsel %vm456, %v1259, %v1275
      %v1286 = vsel %vm456, %v1261, %v1277
      %v1287 = vsel %vm456, %v1263, %v1279
      %v1288 = vsel %vm456, %v1265, %v1249
      %v1289 = vsel %vm456, %v1267, %v1251
      %v1290 = vsel %vm456, %v1269, %v1253
      %v1291 = vsel %vm456, %v1271, %v1255
      %v1292 = vsel %vm456, %v1273, %v1257
      %v1293 = vsel %vm456, %v1275, %v1259
      %v1294 = vsel %vm456, %v1277, %v1261
      %v1295 = vsel %vm456, %v1279, %v1263
      %v1296 = vmul.f32 %v1288, %v465
      %v1297 = vmul.f32 %v1280, %v469
      %v1298 = vmul.f32 %v1289, %v465
      %v1299 = vmul.f32 %v1281, %v469
      %v1300 = vmul.f32 %v1290, %v465
      %v1301 = vmul.f32 %v1282, %v469
      %v1302 = vmul.f32 %v1291, %v465
      %v1303 = vmul.f32 %v1283, %v469
      %v1304 = vmul.f32 %v1292, %v465
      %v1305 = vmul.f32 %v1284, %v469
      %v1306 = vmul.f32 %v1293, %v465
      %v1307 = vmul.f32 %v1285, %v469
      %v1308 = vmul.f32 %v1294, %v465
      %v1309 = vmul.f32 %v1286, %v469
      %v1310 = vmul.f32 %v1295, %v465
      %v1311 = vmul.f32 %v1287, %v469
      %v1312 = vpack.c.bf16 %v1298, %v1296
      %v1313 = vpack.c.bf16 %v1299, %v1297
      %v1314 = vpack.c.bf16 %v1302, %v1300
      %v1315 = vpack.c.bf16 %v1303, %v1301
      %v1316 = vpack.c.bf16 %v1306, %v1304
      %v1317 = vpack.c.bf16 %v1307, %v1305
      %v1318 = vpack.c.bf16 %v1310, %v1308
      %v1319 = vpack.c.bf16 %v1311, %v1309
      %v1324 = vunpack.c.l.b16 %v1244
      %v1325 = vunpack.c.l.b16 %v1245
      %v1326 = vunpack.c.l.b16 %v1246
      %v1327 = vunpack.c.l.b16 %v1247
      %v1328 = vpack.c.b16 %v1325, %v1324
      %v1329 = vpack.c.b16 %v1327, %v1326
      %v1331 = vsel %vm1114, %v1328, 0
      %v1334 = vsel %vm1114, %v1329, 0
      %1336 = vmatprep.subr.bf16.mxu0 %v1313
      %1337 = vmatpush1.bf16.msra.mxu0 %v1312
      %1338 = vmatprep.subr.bf16.mxu0 %v1315
      %1339 = vmatpush1.bf16.msra.mxu0 %v1314
      %1340 = vmatprep.subr.bf16.mxu0 %v1317
      %1341 = vmatpush1.bf16.msra.mxu0 %v1316
      %1342 = vmatprep.subr.bf16.mxu0 %v1319
      %1343 = vmatpush1.bf16.msra.mxu0 %v1318
      %1344 = vmatprep.subr.bf16.mxu0 0
      %1345 = vmatpush1.bf16.msra.mxu0 0
      %1346 = vmatprep.subr.bf16.mxu0 0
      %1347 = vmatpush1.bf16.msra.mxu0 0
      %1348 = vmatprep.subr.bf16.mxu0 0
      %1349 = vmatpush1.bf16.msra.mxu0 0
      %1350 = vmatprep.subr.bf16.mxu0 0
      %1351 = vmatpush1.bf16.msra.mxu0 0
      %1352 = vmatprep.subr.bf16.mxu0 0
      %1353 = vmatpush1.bf16.msra.mxu0 0
      %1354 = vmatprep.subr.bf16.mxu0 0
      %1355 = vmatpush1.bf16.msra.mxu0 0
      %1356 = vmatprep.subr.bf16.mxu0 0
      %1357 = vmatpush1.bf16.msra.mxu0 0
      %1358 = vmatprep.subr.bf16.mxu0 0
      %1359 = vmatpush1.bf16.msra.mxu0 0
      %1360 = vmatprep.subr.bf16.mxu0 0
      %1361 = vmatpush1.bf16.msra.mxu0 0
      %1362 = vmatprep.subr.bf16.mxu0 0
      %1363 = vmatpush1.bf16.msra.mxu0 0
      %1364 = vmatprep.subr.bf16.mxu0 0
      %1365 = vmatpush1.bf16.msra.mxu0 0
      %1366 = vmatprep.subr.bf16.mxu0 0
      %1367 = vmatpush1.bf16.msra.mxu0 0
      %1368 = vmatprep.mubr.bf16.mxu0 0
      %1369 = vmatmul.mubr.bf16.gmra.mrb[0].mxu0 %v1331
      %v1370 = vpop.f32.mrb[0].mxu0
      %v1371 = vadd.f32 0.0, %v1370
      %v1372 = vpop.f32.mrb[0].mxu0
      %v1373 = vadd.f32 0.0, %v1372
      %v1374 = vpop.f32.mrb[0].mxu0
      %v1375 = vadd.f32 0.0, %v1374
      %v1376 = vpop.f32.mrb[0].mxu0
      %v1377 = vadd.f32 0.0, %v1376
      %1378 = vmatprep.mubr.bf16.mxu0 0
      %1379 = vmatmul.mubr.bf16.gmra.mrb[0].mxu0 %v1334
      %v1380 = vpop.f32.mrb[0].mxu0
      %v1381 = vadd.f32 0.0, %v1380
      %v1382 = vpop.f32.mrb[0].mxu0
      %v1383 = vadd.f32 0.0, %v1382
      %v1384 = vpop.f32.mrb[0].mxu0
      %v1385 = vadd.f32 0.0, %v1384
      %v1386 = vpop.f32.mrb[0].mxu0
      %v1387 = vadd.f32 0.0, %v1386
      %1388 = vdwg.mxu0
      %v1389 = vadd.f32 %v1225, %v1371
      %v1390 = vadd.f32 %v1227, %v1373
      %v1391 = vadd.f32 %v1229, %v1375
      %v1392 = vadd.f32 %v1231, %v1377
      %v1393 = vadd.f32 %v1235, %v1381
      %v1394 = vadd.f32 %v1237, %v1383
      %v1395 = vadd.f32 %v1239, %v1385
      %v1396 = vadd.f32 %v1241, %v1387
      %s1397 = scalar_lea.vmem %s5, 48
      %v1398 = vld [vmem:[%s1397] sm:$0xf]
      %v1399 = vld [vmem:[%s1397 + $0x4] sm:$0xf]
      %v1400 = vld [vmem:[%s1397 + $0x8] sm:$0xf]
      %v1401 = vld [vmem:[%s1397 + $0xc] sm:$0xf]
      %1402 = vrot.lane.b32.xlu0 %v935, 1
      %v1403 = vpop.permute.xlu0 %1402
      %1404 = vrot.lane.b32.xlu0 %v937, 1
      %v1405 = vpop.permute.xlu0 %1404
      %1406 = vrot.lane.b32.xlu0 %v939, 1
      %v1407 = vpop.permute.xlu0 %1406
      %1408 = vrot.lane.b32.xlu0 %v941, 1
      %v1409 = vpop.permute.xlu0 %1408
      %1410 = vrot.lane.b32.xlu0 %v943, 1
      %v1411 = vpop.permute.xlu0 %1410
      %1412 = vrot.lane.b32.xlu0 %v945, 1
      %v1413 = vpop.permute.xlu0 %1412
      %1414 = vrot.lane.b32.xlu0 %v947, 1
      %v1415 = vpop.permute.xlu0 %1414
      %1416 = vrot.lane.b32.xlu0 %v949, 1
      %v1417 = vpop.permute.xlu0 %1416
      %1418 = vrot.lane.b32.xlu0 %v936, 1
      %v1419 = vpop.permute.xlu0 %1418
      %1420 = vrot.lane.b32.xlu0 %v938, 1
      %v1421 = vpop.permute.xlu0 %1420
      %1422 = vrot.lane.b32.xlu0 %v940, 1
      %v1423 = vpop.permute.xlu0 %1422
      %1424 = vrot.lane.b32.xlu0 %v942, 1
      %v1425 = vpop.permute.xlu0 %1424
      %1426 = vrot.lane.b32.xlu0 %v944, 1
      %v1427 = vpop.permute.xlu0 %1426
      %1428 = vrot.lane.b32.xlu0 %v946, 1
      %v1429 = vpop.permute.xlu0 %1428
      %1430 = vrot.lane.b32.xlu0 %v948, 1
      %v1431 = vpop.permute.xlu0 %1430
      %1432 = vrot.lane.b32.xlu0 %v950, 1
      %v1433 = vpop.permute.xlu0 %1432
      %v1434 = vsel %vm488, %v1403, %v1419
      %v1435 = vsel %vm488, %v1405, %v1421
      %v1436 = vsel %vm488, %v1407, %v1423
      %v1437 = vsel %vm488, %v1409, %v1425
      %v1438 = vsel %vm488, %v1411, %v1427
      %v1439 = vsel %vm488, %v1413, %v1429
      %v1440 = vsel %vm488, %v1415, %v1431
      %v1441 = vsel %vm488, %v1417, %v1433
      %v1442 = vsel %vm488, %v1419, %v1403
      %v1443 = vsel %vm488, %v1421, %v1405
      %v1444 = vsel %vm488, %v1423, %v1407
      %v1445 = vsel %vm488, %v1425, %v1409
      %v1446 = vsel %vm488, %v1427, %v1411
      %v1447 = vsel %vm488, %v1429, %v1413
      %v1448 = vsel %vm488, %v1431, %v1415
      %v1449 = vsel %vm488, %v1433, %v1417
      %v1450 = vmul.f32 %v1442, %v497
      %v1451 = vmul.f32 %v1434, %v501
      %v1452 = vmul.f32 %v1443, %v497
      %v1453 = vmul.f32 %v1435, %v501
      %v1454 = vmul.f32 %v1444, %v497
      %v1455 = vmul.f32 %v1436, %v501
      %v1456 = vmul.f32 %v1445, %v497
      %v1457 = vmul.f32 %v1437, %v501
      %v1458 = vmul.f32 %v1446, %v497
      %v1459 = vmul.f32 %v1438, %v501
      %v1460 = vmul.f32 %v1447, %v497
      %v1461 = vmul.f32 %v1439, %v501
      %v1462 = vmul.f32 %v1448, %v497
      %v1463 = vmul.f32 %v1440, %v501
      %v1464 = vmul.f32 %v1449, %v497
      %v1465 = vmul.f32 %v1441, %v501
      %v1466 = vpack.c.bf16 %v1452, %v1450
      %v1467 = vpack.c.bf16 %v1453, %v1451
      %v1468 = vpack.c.bf16 %v1456, %v1454
      %v1469 = vpack.c.bf16 %v1457, %v1455
      %v1470 = vpack.c.bf16 %v1460, %v1458
      %v1471 = vpack.c.bf16 %v1461, %v1459
      %v1472 = vpack.c.bf16 %v1464, %v1462
      %v1473 = vpack.c.bf16 %v1465, %v1463
      %v1478 = vunpack.c.l.b16 %v1398
      %v1479 = vunpack.c.l.b16 %v1399
      %v1480 = vunpack.c.l.b16 %v1400
      %v1481 = vunpack.c.l.b16 %v1401
      %v1482 = vpack.c.b16 %v1479, %v1478
      %v1483 = vpack.c.b16 %v1481, %v1480
      %v1485 = vsel %vm1114, %v1482, 0
      %v1488 = vsel %vm1114, %v1483, 0
      %1490 = vmatprep.subr.bf16.mxu0 %v1467
      %1491 = vmatpush1.bf16.msra.mxu0 %v1466
      %1492 = vmatprep.subr.bf16.mxu0 %v1469
      %1493 = vmatpush1.bf16.msra.mxu0 %v1468
      %1494 = vmatprep.subr.bf16.mxu0 %v1471
      %1495 = vmatpush1.bf16.msra.mxu0 %v1470
      %1496 = vmatprep.subr.bf16.mxu0 %v1473
      %1497 = vmatpush1.bf16.msra.mxu0 %v1472
      %1498 = vmatprep.subr.bf16.mxu0 0
      %1499 = vmatpush1.bf16.msra.mxu0 0
      %1500 = vmatprep.subr.bf16.mxu0 0
      %1501 = vmatpush1.bf16.msra.mxu0 0
      %1502 = vmatprep.subr.bf16.mxu0 0
      %1503 = vmatpush1.bf16.msra.mxu0 0
      %1504 = vmatprep.subr.bf16.mxu0 0
      %1505 = vmatpush1.bf16.msra.mxu0 0
      %1506 = vmatprep.subr.bf16.mxu0 0
      %1507 = vmatpush1.bf16.msra.mxu0 0
      %1508 = vmatprep.subr.bf16.mxu0 0
      %1509 = vmatpush1.bf16.msra.mxu0 0
      %1510 = vmatprep.subr.bf16.mxu0 0
      %1511 = vmatpush1.bf16.msra.mxu0 0
      %1512 = vmatprep.subr.bf16.mxu0 0
      %1513 = vmatpush1.bf16.msra.mxu0 0
      %1514 = vmatprep.subr.bf16.mxu0 0
      %1515 = vmatpush1.bf16.msra.mxu0 0
      %1516 = vmatprep.subr.bf16.mxu0 0
      %1517 = vmatpush1.bf16.msra.mxu0 0
      %1518 = vmatprep.subr.bf16.mxu0 0
      %1519 = vmatpush1.bf16.msra.mxu0 0
      %1520 = vmatprep.subr.bf16.mxu0 0
      %1521 = vmatpush1.bf16.msra.mxu0 0
      %1522 = vmatprep.mubr.bf16.mxu0 0
      %1523 = vmatmul.mubr.bf16.gmra.mrb[0].mxu0 %v1485
      %v1524 = vpop.f32.mrb[0].mxu0
      %v1525 = vadd.f32 0.0, %v1524
      %v1526 = vpop.f32.mrb[0].mxu0
      %v1527 = vadd.f32 0.0, %v1526
      %v1528 = vpop.f32.mrb[0].mxu0
      %v1529 = vadd.f32 0.0, %v1528
      %v1530 = vpop.f32.mrb[0].mxu0
      %v1531 = vadd.f32 0.0, %v1530
      %1532 = vmatprep.mubr.bf16.mxu0 0
      %1533 = vmatmul.mubr.bf16.gmra.mrb[0].mxu0 %v1488
      %v1534 = vpop.f32.mrb[0].mxu0
      %v1535 = vadd.f32 0.0, %v1534
      %v1536 = vpop.f32.mrb[0].mxu0
      %v1537 = vadd.f32 0.0, %v1536
      %v1538 = vpop.f32.mrb[0].mxu0
      %v1539 = vadd.f32 0.0, %v1538
      %v1540 = vpop.f32.mrb[0].mxu0
      %v1541 = vadd.f32 0.0, %v1540
      %1542 = vdwg.mxu0
      %v1543 = vadd.f32 %v1389, %v1525
      %v1544 = vadd.f32 %v1390, %v1527
      %v1545 = vadd.f32 %v1391, %v1529
      %v1546 = vadd.f32 %v1392, %v1531
      %v1547 = vadd.f32 %v1393, %v1535
      %v1548 = vadd.f32 %v1394, %v1537
      %v1549 = vadd.f32 %v1395, %v1539
      %v1550 = vadd.f32 %v1396, %v1541
      %s1551 = scalar_lea.vmem %s5, 64
      %v1552 = vld [vmem:[%s1551] sm:$0xf]
      %v1553 = vld [vmem:[%s1551 + $0x4] sm:$0xf]
      %v1554 = vld [vmem:[%s1551 + $0x8] sm:$0xf]
      %v1555 = vld [vmem:[%s1551 + $0xc] sm:$0xf]
      %v1556 = vmul.f32 %v935, %v516
      %v1557 = vmul.f32 %v936, %v520
      %v1558 = vmul.f32 %v937, %v516
      %v1559 = vmul.f32 %v938, %v520
      %v1560 = vmul.f32 %v939, %v516
      %v1561 = vmul.f32 %v940, %v520
      %v1562 = vmul.f32 %v941, %v516
      %v1563 = vmul.f32 %v942, %v520
      %v1564 = vmul.f32 %v943, %v516
      %v1565 = vmul.f32 %v944, %v520
      %v1566 = vmul.f32 %v945, %v516
      %v1567 = vmul.f32 %v946, %v520
      %v1568 = vmul.f32 %v947, %v516
      %v1569 = vmul.f32 %v948, %v520
      %v1570 = vmul.f32 %v949, %v516
      %v1571 = vmul.f32 %v950, %v520
      %v1572 = vpack.c.bf16 %v1558, %v1556
      %v1573 = vpack.c.bf16 %v1559, %v1557
      %v1574 = vpack.c.bf16 %v1562, %v1560
      %v1575 = vpack.c.bf16 %v1563, %v1561
      %v1576 = vpack.c.bf16 %v1566, %v1564
      %v1577 = vpack.c.bf16 %v1567, %v1565
      %v1578 = vpack.c.bf16 %v1570, %v1568
      %v1579 = vpack.c.bf16 %v1571, %v1569
      %v1584 = vunpack.c.l.b16 %v1552
      %v1585 = vunpack.c.l.b16 %v1553
      %v1586 = vunpack.c.l.b16 %v1554
      %v1587 = vunpack.c.l.b16 %v1555
      %v1588 = vpack.c.b16 %v1585, %v1584
      %v1589 = vpack.c.b16 %v1587, %v1586
      %v1591 = vsel %vm1114, %v1588, 0
      %v1594 = vsel %vm1114, %v1589, 0
      %1596 = vmatprep.subr.bf16.mxu0 %v1573
      %1597 = vmatpush1.bf16.msra.mxu0 %v1572
      %1598 = vmatprep.subr.bf16.mxu0 %v1575
      %1599 = vmatpush1.bf16.msra.mxu0 %v1574
      %1600 = vmatprep.subr.bf16.mxu0 %v1577
      %1601 = vmatpush1.bf16.msra.mxu0 %v1576
      %1602 = vmatprep.subr.bf16.mxu0 %v1579
      %1603 = vmatpush1.bf16.msra.mxu0 %v1578
      %1604 = vmatprep.subr.bf16.mxu0 0
      %1605 = vmatpush1.bf16.msra.mxu0 0
      %1606 = vmatprep.subr.bf16.mxu0 0
      %1607 = vmatpush1.bf16.msra.mxu0 0
      %1608 = vmatprep.subr.bf16.mxu0 0
      %1609 = vmatpush1.bf16.msra.mxu0 0
      %1610 = vmatprep.subr.bf16.mxu0 0
      %1611 = vmatpush1.bf16.msra.mxu0 0
      %1612 = vmatprep.subr.bf16.mxu0 0
      %1613 = vmatpush1.bf16.msra.mxu0 0
      %1614 = vmatprep.subr.bf16.mxu0 0
      %1615 = vmatpush1.bf16.msra.mxu0 0
      %1616 = vmatprep.subr.bf16.mxu0 0
      %1617 = vmatpush1.bf16.msra.mxu0 0
      %1618 = vmatprep.subr.bf16.mxu0 0
      %1619 = vmatpush1.bf16.msra.mxu0 0
      %1620 = vmatprep.subr.bf16.mxu0 0
      %1621 = vmatpush1.bf16.msra.mxu0 0
      %1622 = vmatprep.subr.bf16.mxu0 0
      %1623 = vmatpush1.bf16.msra.mxu0 0
      %1624 = vmatprep.subr.bf16.mxu0 0
      %1625 = vmatpush1.bf16.msra.mxu0 0
      %1626 = vmatprep.subr.bf16.mxu0 0
      %1627 = vmatpush1.bf16.msra.mxu0 0
      %1628 = vmatprep.mubr.bf16.mxu0 0
      %1629 = vmatmul.mubr.bf16.gmra.mrb[0].mxu0 %v1591
      %v1630 = vpop.f32.mrb[0].mxu0
      %v1631 = vadd.f32 0.0, %v1630
      %v1632 = vpop.f32.mrb[0].mxu0
      %v1633 = vadd.f32 0.0, %v1632
      %v1634 = vpop.f32.mrb[0].mxu0
      %v1635 = vadd.f32 0.0, %v1634
      %v1636 = vpop.f32.mrb[0].mxu0
      %v1637 = vadd.f32 0.0, %v1636
      %1638 = vmatprep.mubr.bf16.mxu0 0
      %1639 = vmatmul.mubr.bf16.gmra.mrb[0].mxu0 %v1594
      %v1640 = vpop.f32.mrb[0].mxu0
      %v1641 = vadd.f32 0.0, %v1640
      %v1642 = vpop.f32.mrb[0].mxu0
      %v1643 = vadd.f32 0.0, %v1642
      %v1644 = vpop.f32.mrb[0].mxu0
      %v1645 = vadd.f32 0.0, %v1644
      %v1646 = vpop.f32.mrb[0].mxu0
      %v1647 = vadd.f32 0.0, %v1646
      %1648 = vdwg.mxu0
      %v1649 = vadd.f32 %v1543, %v1631
      %v1650 = vadd.f32 %v1544, %v1633
      %v1651 = vadd.f32 %v1545, %v1635
      %v1652 = vadd.f32 %v1546, %v1637
      %v1653 = vadd.f32 %v1547, %v1641
      %v1654 = vadd.f32 %v1548, %v1643
      %v1655 = vadd.f32 %v1549, %v1645
      %v1656 = vadd.f32 %v1550, %v1647
      %s1657 = scalar_lea.vmem %s5, 80
      %v1658 = vld [vmem:[%s1657] sm:$0xf]
      %v1659 = vld [vmem:[%s1657 + $0x4] sm:$0xf]
      %v1660 = vld [vmem:[%s1657 + $0x8] sm:$0xf]
      %v1661 = vld [vmem:[%s1657 + $0xc] sm:$0xf]
      %1662 = vrot.lane.b32.xlu0 %v935, 127
      %v1663 = vpop.permute.xlu0 %1662
      %1664 = vrot.lane.b32.xlu0 %v937, 127
      %v1665 = vpop.permute.xlu0 %1664
      %1666 = vrot.lane.b32.xlu0 %v939, 127
      %v1667 = vpop.permute.xlu0 %1666
      %1668 = vrot.lane.b32.xlu0 %v941, 127
      %v1669 = vpop.permute.xlu0 %1668
      %1670 = vrot.lane.b32.xlu0 %v943, 127
      %v1671 = vpop.permute.xlu0 %1670
      %1672 = vrot.lane.b32.xlu0 %v945, 127
      %v1673 = vpop.permute.xlu0 %1672
      %1674 = vrot.lane.b32.xlu0 %v947, 127
      %v1675 = vpop.permute.xlu0 %1674
      %1676 = vrot.lane.b32.xlu0 %v949, 127
      %v1677 = vpop.permute.xlu0 %1676
      %1678 = vrot.lane.b32.xlu0 %v936, 127
      %v1679 = vpop.permute.xlu0 %1678
      %1680 = vrot.lane.b32.xlu0 %v938, 127
      %v1681 = vpop.permute.xlu0 %1680
      %1682 = vrot.lane.b32.xlu0 %v940, 127
      %v1683 = vpop.permute.xlu0 %1682
      %1684 = vrot.lane.b32.xlu0 %v942, 127
      %v1685 = vpop.permute.xlu0 %1684
      %1686 = vrot.lane.b32.xlu0 %v944, 127
      %v1687 = vpop.permute.xlu0 %1686
      %1688 = vrot.lane.b32.xlu0 %v946, 127
      %v1689 = vpop.permute.xlu0 %1688
      %1690 = vrot.lane.b32.xlu0 %v948, 127
      %v1691 = vpop.permute.xlu0 %1690
      %1692 = vrot.lane.b32.xlu0 %v950, 127
      %v1693 = vpop.permute.xlu0 %1692
      %v1694 = vsel %vm539, %v1663, %v1679
      %v1695 = vsel %vm539, %v1665, %v1681
      %v1696 = vsel %vm539, %v1667, %v1683
      %v1697 = vsel %vm539, %v1669, %v1685
      %v1698 = vsel %vm539, %v1671, %v1687
      %v1699 = vsel %vm539, %v1673, %v1689
      %v1700 = vsel %vm539, %v1675, %v1691
      %v1701 = vsel %vm539, %v1677, %v1693
      %v1702 = vsel %vm539, %v1679, %v1663
      %v1703 = vsel %vm539, %v1681, %v1665
      %v1704 = vsel %vm539, %v1683, %v1667
      %v1705 = vsel %vm539, %v1685, %v1669
      %v1706 = vsel %vm539, %v1687, %v1671
      %v1707 = vsel %vm539, %v1689, %v1673
      %v1708 = vsel %vm539, %v1691, %v1675
      %v1709 = vsel %vm539, %v1693, %v1677
      %v1710 = vmul.f32 %v1694, %v548
      %v1711 = vmul.f32 %v1702, %v552
      %v1712 = vmul.f32 %v1695, %v548
      %v1713 = vmul.f32 %v1703, %v552
      %v1714 = vmul.f32 %v1696, %v548
      %v1715 = vmul.f32 %v1704, %v552
      %v1716 = vmul.f32 %v1697, %v548
      %v1717 = vmul.f32 %v1705, %v552
      %v1718 = vmul.f32 %v1698, %v548
      %v1719 = vmul.f32 %v1706, %v552
      %v1720 = vmul.f32 %v1699, %v548
      %v1721 = vmul.f32 %v1707, %v552
      %v1722 = vmul.f32 %v1700, %v548
      %v1723 = vmul.f32 %v1708, %v552
      %v1724 = vmul.f32 %v1701, %v548
      %v1725 = vmul.f32 %v1709, %v552
      %v1726 = vpack.c.bf16 %v1712, %v1710
      %v1727 = vpack.c.bf16 %v1713, %v1711
      %v1728 = vpack.c.bf16 %v1716, %v1714
      %v1729 = vpack.c.bf16 %v1717, %v1715
      %v1730 = vpack.c.bf16 %v1720, %v1718
      %v1731 = vpack.c.bf16 %v1721, %v1719
      %v1732 = vpack.c.bf16 %v1724, %v1722
      %v1733 = vpack.c.bf16 %v1725, %v1723
      %v1738 = vunpack.c.l.b16 %v1658
      %v1739 = vunpack.c.l.b16 %v1659
      %v1740 = vunpack.c.l.b16 %v1660
      %v1741 = vunpack.c.l.b16 %v1661
      %v1742 = vpack.c.b16 %v1739, %v1738
      %v1743 = vpack.c.b16 %v1741, %v1740
      %v1745 = vsel %vm1114, %v1742, 0
      %v1748 = vsel %vm1114, %v1743, 0
      %1750 = vmatprep.subr.bf16.mxu0 %v1727
      %1751 = vmatpush1.bf16.msra.mxu0 %v1726
      %1752 = vmatprep.subr.bf16.mxu0 %v1729
      %1753 = vmatpush1.bf16.msra.mxu0 %v1728
      %1754 = vmatprep.subr.bf16.mxu0 %v1731
      %1755 = vmatpush1.bf16.msra.mxu0 %v1730
      %1756 = vmatprep.subr.bf16.mxu0 %v1733
      %1757 = vmatpush1.bf16.msra.mxu0 %v1732
      %1758 = vmatprep.subr.bf16.mxu0 0
      %1759 = vmatpush1.bf16.msra.mxu0 0
      %1760 = vmatprep.subr.bf16.mxu0 0
      %1761 = vmatpush1.bf16.msra.mxu0 0
      %1762 = vmatprep.subr.bf16.mxu0 0
      %1763 = vmatpush1.bf16.msra.mxu0 0
      %1764 = vmatprep.subr.bf16.mxu0 0
      %1765 = vmatpush1.bf16.msra.mxu0 0
      %1766 = vmatprep.subr.bf16.mxu0 0
      %1767 = vmatpush1.bf16.msra.mxu0 0
      %1768 = vmatprep.subr.bf16.mxu0 0
      %1769 = vmatpush1.bf16.msra.mxu0 0
      %1770 = vmatprep.subr.bf16.mxu0 0
      %1771 = vmatpush1.bf16.msra.mxu0 0
      %1772 = vmatprep.subr.bf16.mxu0 0
      %1773 = vmatpush1.bf16.msra.mxu0 0
      %1774 = vmatprep.subr.bf16.mxu0 0
      %1775 = vmatpush1.bf16.msra.mxu0 0
      %1776 = vmatprep.subr.bf16.mxu0 0
      %1777 = vmatpush1.bf16.msra.mxu0 0
      %1778 = vmatprep.subr.bf16.mxu0 0
      %1779 = vmatpush1.bf16.msra.mxu0 0
      %1780 = vmatprep.subr.bf16.mxu0 0
      %1781 = vmatpush1.bf16.msra.mxu0 0
      %1782 = vmatprep.mubr.bf16.mxu0 0
      %1783 = vmatmul.mubr.bf16.gmra.mrb[0].mxu0 %v1745
      %v1784 = vpop.f32.mrb[0].mxu0
      %v1785 = vadd.f32 0.0, %v1784
      %v1786 = vpop.f32.mrb[0].mxu0
      %v1787 = vadd.f32 0.0, %v1786
      %v1788 = vpop.f32.mrb[0].mxu0
      %v1789 = vadd.f32 0.0, %v1788
      %v1790 = vpop.f32.mrb[0].mxu0
      %v1791 = vadd.f32 0.0, %v1790
      %1792 = vmatprep.mubr.bf16.mxu0 0
      %1793 = vmatmul.mubr.bf16.gmra.mrb[0].mxu0 %v1748
      %v1794 = vpop.f32.mrb[0].mxu0
      %v1795 = vadd.f32 0.0, %v1794
      %v1796 = vpop.f32.mrb[0].mxu0
      %v1797 = vadd.f32 0.0, %v1796
      %v1798 = vpop.f32.mrb[0].mxu0
      %v1799 = vadd.f32 0.0, %v1798
      %v1800 = vpop.f32.mrb[0].mxu0
      %v1801 = vadd.f32 0.0, %v1800
      %1802 = vdwg.mxu0
      %v1803 = vadd.f32 %v1649, %v1785
      %v1804 = vadd.f32 %v1650, %v1787
      %v1805 = vadd.f32 %v1651, %v1789
      %v1806 = vadd.f32 %v1652, %v1791
      %v1807 = vadd.f32 %v1653, %v1795
      %v1808 = vadd.f32 %v1654, %v1797
      %v1809 = vadd.f32 %v1655, %v1799
      %v1810 = vadd.f32 %v1656, %v1801
      %s1811 = scalar_lea.vmem %s5, 96
      %v1812 = vld [vmem:[%s1811] sm:$0xf]
      %v1813 = vld [vmem:[%s1811 + $0x4] sm:$0xf]
      %v1814 = vld [vmem:[%s1811 + $0x8] sm:$0xf]
      %v1815 = vld [vmem:[%s1811 + $0xc] sm:$0xf]
      %1816 = vrot.lane.b32.xlu0 %v935, 113
      %v1817 = vpop.permute.xlu0 %1816
      %1818 = vrot.lane.b32.xlu0 %v937, 113
      %v1819 = vpop.permute.xlu0 %1818
      %1820 = vrot.lane.b32.xlu0 %v939, 113
      %v1821 = vpop.permute.xlu0 %1820
      %1822 = vrot.lane.b32.xlu0 %v941, 113
      %v1823 = vpop.permute.xlu0 %1822
      %1824 = vrot.lane.b32.xlu0 %v943, 113
      %v1825 = vpop.permute.xlu0 %1824
      %1826 = vrot.lane.b32.xlu0 %v945, 113
      %v1827 = vpop.permute.xlu0 %1826
      %1828 = vrot.lane.b32.xlu0 %v947, 113
      %v1829 = vpop.permute.xlu0 %1828
      %1830 = vrot.lane.b32.xlu0 %v949, 113
      %v1831 = vpop.permute.xlu0 %1830
      %1832 = vrot.lane.b32.xlu0 %v936, 113
      %v1833 = vpop.permute.xlu0 %1832
      %1834 = vrot.lane.b32.xlu0 %v938, 113
      %v1835 = vpop.permute.xlu0 %1834
      %1836 = vrot.lane.b32.xlu0 %v940, 113
      %v1837 = vpop.permute.xlu0 %1836
      %1838 = vrot.lane.b32.xlu0 %v942, 113
      %v1839 = vpop.permute.xlu0 %1838
      %1840 = vrot.lane.b32.xlu0 %v944, 113
      %v1841 = vpop.permute.xlu0 %1840
      %1842 = vrot.lane.b32.xlu0 %v946, 113
      %v1843 = vpop.permute.xlu0 %1842
      %1844 = vrot.lane.b32.xlu0 %v948, 113
      %v1845 = vpop.permute.xlu0 %1844
      %1846 = vrot.lane.b32.xlu0 %v950, 113
      %v1847 = vpop.permute.xlu0 %1846
      %v1848 = vsel %vm571, %v1817, %v1833
      %v1849 = vsel %vm571, %v1819, %v1835
      %v1850 = vsel %vm571, %v1821, %v1837
      %v1851 = vsel %vm571, %v1823, %v1839
      %v1852 = vsel %vm571, %v1825, %v1841
      %v1853 = vsel %vm571, %v1827, %v1843
      %v1854 = vsel %vm571, %v1829, %v1845
      %v1855 = vsel %vm571, %v1831, %v1847
      %v1856 = vsel %vm571, %v1833, %v1817
      %v1857 = vsel %vm571, %v1835, %v1819
      %v1858 = vsel %vm571, %v1837, %v1821
      %v1859 = vsel %vm571, %v1839, %v1823
      %v1860 = vsel %vm571, %v1841, %v1825
      %v1861 = vsel %vm571, %v1843, %v1827
      %v1862 = vsel %vm571, %v1845, %v1829
      %v1863 = vsel %vm571, %v1847, %v1831
      %v1864 = vmul.f32 %v1848, %v580
      %v1865 = vmul.f32 %v1856, %v584
      %v1866 = vmul.f32 %v1849, %v580
      %v1867 = vmul.f32 %v1857, %v584
      %v1868 = vmul.f32 %v1850, %v580
      %v1869 = vmul.f32 %v1858, %v584
      %v1870 = vmul.f32 %v1851, %v580
      %v1871 = vmul.f32 %v1859, %v584
      %v1872 = vmul.f32 %v1852, %v580
      %v1873 = vmul.f32 %v1860, %v584
      %v1874 = vmul.f32 %v1853, %v580
      %v1875 = vmul.f32 %v1861, %v584
      %v1876 = vmul.f32 %v1854, %v580
      %v1877 = vmul.f32 %v1862, %v584
      %v1878 = vmul.f32 %v1855, %v580
      %v1879 = vmul.f32 %v1863, %v584
      %v1880 = vpack.c.bf16 %v1866, %v1864
      %v1881 = vpack.c.bf16 %v1867, %v1865
      %v1882 = vpack.c.bf16 %v1870, %v1868
      %v1883 = vpack.c.bf16 %v1871, %v1869
      %v1884 = vpack.c.bf16 %v1874, %v1872
      %v1885 = vpack.c.bf16 %v1875, %v1873
      %v1886 = vpack.c.bf16 %v1878, %v1876
      %v1887 = vpack.c.bf16 %v1879, %v1877
      %v1892 = vunpack.c.l.b16 %v1812
      %v1893 = vunpack.c.l.b16 %v1813
      %v1894 = vunpack.c.l.b16 %v1814
      %v1895 = vunpack.c.l.b16 %v1815
      %v1896 = vpack.c.b16 %v1893, %v1892
      %v1897 = vpack.c.b16 %v1895, %v1894
      %v1899 = vsel %vm1114, %v1896, 0
      %v1902 = vsel %vm1114, %v1897, 0
      %1904 = vmatprep.subr.bf16.mxu0 %v1881
      %1905 = vmatpush1.bf16.msra.mxu0 %v1880
      %1906 = vmatprep.subr.bf16.mxu0 %v1883
      %1907 = vmatpush1.bf16.msra.mxu0 %v1882
      %1908 = vmatprep.subr.bf16.mxu0 %v1885
      %1909 = vmatpush1.bf16.msra.mxu0 %v1884
      %1910 = vmatprep.subr.bf16.mxu0 %v1887
      %1911 = vmatpush1.bf16.msra.mxu0 %v1886
      %1912 = vmatprep.subr.bf16.mxu0 0
      %1913 = vmatpush1.bf16.msra.mxu0 0
      %1914 = vmatprep.subr.bf16.mxu0 0
      %1915 = vmatpush1.bf16.msra.mxu0 0
      %1916 = vmatprep.subr.bf16.mxu0 0
      %1917 = vmatpush1.bf16.msra.mxu0 0
      %1918 = vmatprep.subr.bf16.mxu0 0
      %1919 = vmatpush1.bf16.msra.mxu0 0
      %1920 = vmatprep.subr.bf16.mxu0 0
      %1921 = vmatpush1.bf16.msra.mxu0 0
      %1922 = vmatprep.subr.bf16.mxu0 0
      %1923 = vmatpush1.bf16.msra.mxu0 0
      %1924 = vmatprep.subr.bf16.mxu0 0
      %1925 = vmatpush1.bf16.msra.mxu0 0
      %1926 = vmatprep.subr.bf16.mxu0 0
      %1927 = vmatpush1.bf16.msra.mxu0 0
      %1928 = vmatprep.subr.bf16.mxu0 0
      %1929 = vmatpush1.bf16.msra.mxu0 0
      %1930 = vmatprep.subr.bf16.mxu0 0
      %1931 = vmatpush1.bf16.msra.mxu0 0
      %1932 = vmatprep.subr.bf16.mxu0 0
      %1933 = vmatpush1.bf16.msra.mxu0 0
      %1934 = vmatprep.subr.bf16.mxu0 0
      %1935 = vmatpush1.bf16.msra.mxu0 0
      %1936 = vmatprep.mubr.bf16.mxu0 0
      %1937 = vmatmul.mubr.bf16.gmra.mrb[0].mxu0 %v1899
      %v1938 = vpop.f32.mrb[0].mxu0
      %v1939 = vadd.f32 0.0, %v1938
      %v1940 = vpop.f32.mrb[0].mxu0
      %v1941 = vadd.f32 0.0, %v1940
      %v1942 = vpop.f32.mrb[0].mxu0
      %v1943 = vadd.f32 0.0, %v1942
      %v1944 = vpop.f32.mrb[0].mxu0
      %v1945 = vadd.f32 0.0, %v1944
      %1946 = vmatprep.mubr.bf16.mxu0 0
      %1947 = vmatmul.mubr.bf16.gmra.mrb[0].mxu0 %v1902
      %v1948 = vpop.f32.mrb[0].mxu0
      %v1949 = vadd.f32 0.0, %v1948
      %v1950 = vpop.f32.mrb[0].mxu0
      %v1951 = vadd.f32 0.0, %v1950
      %v1952 = vpop.f32.mrb[0].mxu0
      %v1953 = vadd.f32 0.0, %v1952
      %v1954 = vpop.f32.mrb[0].mxu0
      %v1955 = vadd.f32 0.0, %v1954
      %1956 = vdwg.mxu0
      %v1957 = vadd.f32 %v1803, %v1939
      %v1958 = vadd.f32 %v1804, %v1941
      %v1959 = vadd.f32 %v1805, %v1943
      %v1960 = vadd.f32 %v1806, %v1945
      %v1961 = vadd.f32 %v1807, %v1949
      %v1962 = vadd.f32 %v1808, %v1951
      %v1963 = vadd.f32 %v1809, %v1953
      %v1964 = vadd.f32 %v1810, %v1955
      %s1965 = scalar_lea.vmem %s5, 112
      %v1966 = vld [vmem:[%s1965] sm:$0xf]
      %v1967 = vld [vmem:[%s1965 + $0x4] sm:$0xf]
      %v1968 = vld [vmem:[%s1965 + $0x8] sm:$0xf]
      %v1969 = vld [vmem:[%s1965 + $0xc] sm:$0xf]
      %1970 = vrot.lane.b32.xlu0 %v935, 112
      %v1971 = vpop.permute.xlu0 %1970
      %1972 = vrot.lane.b32.xlu0 %v937, 112
      %v1973 = vpop.permute.xlu0 %1972
      %1974 = vrot.lane.b32.xlu0 %v939, 112
      %v1975 = vpop.permute.xlu0 %1974
      %1976 = vrot.lane.b32.xlu0 %v941, 112
      %v1977 = vpop.permute.xlu0 %1976
      %1978 = vrot.lane.b32.xlu0 %v943, 112
      %v1979 = vpop.permute.xlu0 %1978
      %1980 = vrot.lane.b32.xlu0 %v945, 112
      %v1981 = vpop.permute.xlu0 %1980
      %1982 = vrot.lane.b32.xlu0 %v947, 112
      %v1983 = vpop.permute.xlu0 %1982
      %1984 = vrot.lane.b32.xlu0 %v949, 112
      %v1985 = vpop.permute.xlu0 %1984
      %1986 = vrot.lane.b32.xlu0 %v936, 112
      %v1987 = vpop.permute.xlu0 %1986
      %1988 = vrot.lane.b32.xlu0 %v938, 112
      %v1989 = vpop.permute.xlu0 %1988
      %1990 = vrot.lane.b32.xlu0 %v940, 112
      %v1991 = vpop.permute.xlu0 %1990
      %1992 = vrot.lane.b32.xlu0 %v942, 112
      %v1993 = vpop.permute.xlu0 %1992
      %1994 = vrot.lane.b32.xlu0 %v944, 112
      %v1995 = vpop.permute.xlu0 %1994
      %1996 = vrot.lane.b32.xlu0 %v946, 112
      %v1997 = vpop.permute.xlu0 %1996
      %1998 = vrot.lane.b32.xlu0 %v948, 112
      %v1999 = vpop.permute.xlu0 %1998
      %2000 = vrot.lane.b32.xlu0 %v950, 112
      %v2001 = vpop.permute.xlu0 %2000
      %v2002 = vsel %vm603, %v1971, %v1987
      %v2003 = vsel %vm603, %v1973, %v1989
      %v2004 = vsel %vm603, %v1975, %v1991
      %v2005 = vsel %vm603, %v1977, %v1993
      %v2006 = vsel %vm603, %v1979, %v1995
      %v2007 = vsel %vm603, %v1981, %v1997
      %v2008 = vsel %vm603, %v1983, %v1999
      %v2009 = vsel %vm603, %v1985, %v2001
      %v2010 = vsel %vm603, %v1987, %v1971
      %v2011 = vsel %vm603, %v1989, %v1973
      %v2012 = vsel %vm603, %v1991, %v1975
      %v2013 = vsel %vm603, %v1993, %v1977
      %v2014 = vsel %vm603, %v1995, %v1979
      %v2015 = vsel %vm603, %v1997, %v1981
      %v2016 = vsel %vm603, %v1999, %v1983
      %v2017 = vsel %vm603, %v2001, %v1985
      %v2018 = vmul.f32 %v2002, %v612
      %v2019 = vmul.f32 %v2010, %v616
      %v2020 = vmul.f32 %v2003, %v612
      %v2021 = vmul.f32 %v2011, %v616
      %v2022 = vmul.f32 %v2004, %v612
      %v2023 = vmul.f32 %v2012, %v616
      %v2024 = vmul.f32 %v2005, %v612
      %v2025 = vmul.f32 %v2013, %v616
      %v2026 = vmul.f32 %v2006, %v612
      %v2027 = vmul.f32 %v2014, %v616
      %v2028 = vmul.f32 %v2007, %v612
      %v2029 = vmul.f32 %v2015, %v616
      %v2030 = vmul.f32 %v2008, %v612
      %v2031 = vmul.f32 %v2016, %v616
      %v2032 = vmul.f32 %v2009, %v612
      %v2033 = vmul.f32 %v2017, %v616
      %v2034 = vpack.c.bf16 %v2020, %v2018
      %v2035 = vpack.c.bf16 %v2021, %v2019
      %v2036 = vpack.c.bf16 %v2024, %v2022
      %v2037 = vpack.c.bf16 %v2025, %v2023
      %v2038 = vpack.c.bf16 %v2028, %v2026
      %v2039 = vpack.c.bf16 %v2029, %v2027
      %v2040 = vpack.c.bf16 %v2032, %v2030
      %v2041 = vpack.c.bf16 %v2033, %v2031
      %v2046 = vunpack.c.l.b16 %v1966
      %v2047 = vunpack.c.l.b16 %v1967
      %v2048 = vunpack.c.l.b16 %v1968
      %v2049 = vunpack.c.l.b16 %v1969
      %v2050 = vpack.c.b16 %v2047, %v2046
      %v2051 = vpack.c.b16 %v2049, %v2048
      %v2053 = vsel %vm1114, %v2050, 0
      %v2056 = vsel %vm1114, %v2051, 0
      %2058 = vmatprep.subr.bf16.mxu0 %v2035
      %2059 = vmatpush1.bf16.msra.mxu0 %v2034
      %2060 = vmatprep.subr.bf16.mxu0 %v2037
      %2061 = vmatpush1.bf16.msra.mxu0 %v2036
      %2062 = vmatprep.subr.bf16.mxu0 %v2039
      %2063 = vmatpush1.bf16.msra.mxu0 %v2038
      %2064 = vmatprep.subr.bf16.mxu0 %v2041
      %2065 = vmatpush1.bf16.msra.mxu0 %v2040
      %2066 = vmatprep.subr.bf16.mxu0 0
      %2067 = vmatpush1.bf16.msra.mxu0 0
      %2068 = vmatprep.subr.bf16.mxu0 0
      %2069 = vmatpush1.bf16.msra.mxu0 0
      %2070 = vmatprep.subr.bf16.mxu0 0
      %2071 = vmatpush1.bf16.msra.mxu0 0
      %2072 = vmatprep.subr.bf16.mxu0 0
      %2073 = vmatpush1.bf16.msra.mxu0 0
      %2074 = vmatprep.subr.bf16.mxu0 0
      %2075 = vmatpush1.bf16.msra.mxu0 0
      %2076 = vmatprep.subr.bf16.mxu0 0
      %2077 = vmatpush1.bf16.msra.mxu0 0
      %2078 = vmatprep.subr.bf16.mxu0 0
      %2079 = vmatpush1.bf16.msra.mxu0 0
      %2080 = vmatprep.subr.bf16.mxu0 0
      %2081 = vmatpush1.bf16.msra.mxu0 0
      %2082 = vmatprep.subr.bf16.mxu0 0
      %2083 = vmatpush1.bf16.msra.mxu0 0
      %2084 = vmatprep.subr.bf16.mxu0 0
      %2085 = vmatpush1.bf16.msra.mxu0 0
      %2086 = vmatprep.subr.bf16.mxu0 0
      %2087 = vmatpush1.bf16.msra.mxu0 0
      %2088 = vmatprep.subr.bf16.mxu0 0
      %2089 = vmatpush1.bf16.msra.mxu0 0
      %2090 = vmatprep.mubr.bf16.mxu0 0
      %2091 = vmatmul.mubr.bf16.gmra.mrb[0].mxu0 %v2053
      %v2092 = vpop.f32.mrb[0].mxu0
      %v2093 = vadd.f32 0.0, %v2092
      %v2094 = vpop.f32.mrb[0].mxu0
      %v2095 = vadd.f32 0.0, %v2094
      %v2096 = vpop.f32.mrb[0].mxu0
      %v2097 = vadd.f32 0.0, %v2096
      %v2098 = vpop.f32.mrb[0].mxu0
      %v2099 = vadd.f32 0.0, %v2098
      %2100 = vmatprep.mubr.bf16.mxu0 0
      %2101 = vmatmul.mubr.bf16.gmra.mrb[0].mxu0 %v2056
      %v2102 = vpop.f32.mrb[0].mxu0
      %v2103 = vadd.f32 0.0, %v2102
      %v2104 = vpop.f32.mrb[0].mxu0
      %v2105 = vadd.f32 0.0, %v2104
      %v2106 = vpop.f32.mrb[0].mxu0
      %v2107 = vadd.f32 0.0, %v2106
      %v2108 = vpop.f32.mrb[0].mxu0
      %v2109 = vadd.f32 0.0, %v2108
      %2110 = vdwg.mxu0
      %v2111 = vadd.f32 %v1957, %v2093
      %v2112 = vadd.f32 %v1958, %v2095
      %v2113 = vadd.f32 %v1959, %v2097
      %v2114 = vadd.f32 %v1960, %v2099
      %v2115 = vadd.f32 %v1961, %v2103
      %v2116 = vadd.f32 %v1962, %v2105
      %v2117 = vadd.f32 %v1963, %v2107
      %v2118 = vadd.f32 %v1964, %v2109
      %s2119 = scalar_lea.vmem %s5, 128
      %v2120 = vld [vmem:[%s2119] sm:$0xf]
      %v2121 = vld [vmem:[%s2119 + $0x4] sm:$0xf]
      %v2122 = vld [vmem:[%s2119 + $0x8] sm:$0xf]
      %v2123 = vld [vmem:[%s2119 + $0xc] sm:$0xf]
      %2124 = vrot.lane.b32.xlu0 %v935, 111
      %v2125 = vpop.permute.xlu0 %2124
      %2126 = vrot.lane.b32.xlu0 %v937, 111
      %v2127 = vpop.permute.xlu0 %2126
      %2128 = vrot.lane.b32.xlu0 %v939, 111
      %v2129 = vpop.permute.xlu0 %2128
      %2130 = vrot.lane.b32.xlu0 %v941, 111
      %v2131 = vpop.permute.xlu0 %2130
      %2132 = vrot.lane.b32.xlu0 %v943, 111
      %v2133 = vpop.permute.xlu0 %2132
      %2134 = vrot.lane.b32.xlu0 %v945, 111
      %v2135 = vpop.permute.xlu0 %2134
      %2136 = vrot.lane.b32.xlu0 %v947, 111
      %v2137 = vpop.permute.xlu0 %2136
      %2138 = vrot.lane.b32.xlu0 %v949, 111
      %v2139 = vpop.permute.xlu0 %2138
      %2140 = vrot.lane.b32.xlu0 %v936, 111
      %v2141 = vpop.permute.xlu0 %2140
      %2142 = vrot.lane.b32.xlu0 %v938, 111
      %v2143 = vpop.permute.xlu0 %2142
      %2144 = vrot.lane.b32.xlu0 %v940, 111
      %v2145 = vpop.permute.xlu0 %2144
      %2146 = vrot.lane.b32.xlu0 %v942, 111
      %v2147 = vpop.permute.xlu0 %2146
      %2148 = vrot.lane.b32.xlu0 %v944, 111
      %v2149 = vpop.permute.xlu0 %2148
      %2150 = vrot.lane.b32.xlu0 %v946, 111
      %v2151 = vpop.permute.xlu0 %2150
      %2152 = vrot.lane.b32.xlu0 %v948, 111
      %v2153 = vpop.permute.xlu0 %2152
      %2154 = vrot.lane.b32.xlu0 %v950, 111
      %v2155 = vpop.permute.xlu0 %2154
      %v2156 = vsel %vm635, %v2125, %v2141
      %v2157 = vsel %vm635, %v2127, %v2143
      %v2158 = vsel %vm635, %v2129, %v2145
      %v2159 = vsel %vm635, %v2131, %v2147
      %v2160 = vsel %vm635, %v2133, %v2149
      %v2161 = vsel %vm635, %v2135, %v2151
      %v2162 = vsel %vm635, %v2137, %v2153
      %v2163 = vsel %vm635, %v2139, %v2155
      %v2164 = vsel %vm635, %v2141, %v2125
      %v2165 = vsel %vm635, %v2143, %v2127
      %v2166 = vsel %vm635, %v2145, %v2129
      %v2167 = vsel %vm635, %v2147, %v2131
      %v2168 = vsel %vm635, %v2149, %v2133
      %v2169 = vsel %vm635, %v2151, %v2135
      %v2170 = vsel %vm635, %v2153, %v2137
      %v2171 = vsel %vm635, %v2155, %v2139
      %v2172 = vmul.f32 %v2156, %v644
      %v2173 = vmul.f32 %v2164, %v648
      %v2174 = vmul.f32 %v2157, %v644
      %v2175 = vmul.f32 %v2165, %v648
      %v2176 = vmul.f32 %v2158, %v644
      %v2177 = vmul.f32 %v2166, %v648
      %v2178 = vmul.f32 %v2159, %v644
      %v2179 = vmul.f32 %v2167, %v648
      %v2180 = vmul.f32 %v2160, %v644
      %v2181 = vmul.f32 %v2168, %v648
      %v2182 = vmul.f32 %v2161, %v644
      %v2183 = vmul.f32 %v2169, %v648
      %v2184 = vmul.f32 %v2162, %v644
      %v2185 = vmul.f32 %v2170, %v648
      %v2186 = vmul.f32 %v2163, %v644
      %v2187 = vmul.f32 %v2171, %v648
      %v2188 = vpack.c.bf16 %v2174, %v2172
      %v2189 = vpack.c.bf16 %v2175, %v2173
      %v2190 = vpack.c.bf16 %v2178, %v2176
      %v2191 = vpack.c.bf16 %v2179, %v2177
      %v2192 = vpack.c.bf16 %v2182, %v2180
      %v2193 = vpack.c.bf16 %v2183, %v2181
      %v2194 = vpack.c.bf16 %v2186, %v2184
      %v2195 = vpack.c.bf16 %v2187, %v2185
      %v2200 = vunpack.c.l.b16 %v2120
      %v2201 = vunpack.c.l.b16 %v2121
      %v2202 = vunpack.c.l.b16 %v2122
      %v2203 = vunpack.c.l.b16 %v2123
      %v2204 = vpack.c.b16 %v2201, %v2200
      %v2205 = vpack.c.b16 %v2203, %v2202
      %v2207 = vsel %vm1114, %v2204, 0
      %v2210 = vsel %vm1114, %v2205, 0
      %2212 = vmatprep.subr.bf16.mxu0 %v2189
      %2213 = vmatpush1.bf16.msra.mxu0 %v2188
      %2214 = vmatprep.subr.bf16.mxu0 %v2191
      %2215 = vmatpush1.bf16.msra.mxu0 %v2190
      %2216 = vmatprep.subr.bf16.mxu0 %v2193
      %2217 = vmatpush1.bf16.msra.mxu0 %v2192
      %2218 = vmatprep.subr.bf16.mxu0 %v2195
      %2219 = vmatpush1.bf16.msra.mxu0 %v2194
      %2220 = vmatprep.subr.bf16.mxu0 0
      %2221 = vmatpush1.bf16.msra.mxu0 0
      %2222 = vmatprep.subr.bf16.mxu0 0
      %2223 = vmatpush1.bf16.msra.mxu0 0
      %2224 = vmatprep.subr.bf16.mxu0 0
      %2225 = vmatpush1.bf16.msra.mxu0 0
      %2226 = vmatprep.subr.bf16.mxu0 0
      %2227 = vmatpush1.bf16.msra.mxu0 0
      %2228 = vmatprep.subr.bf16.mxu0 0
      %2229 = vmatpush1.bf16.msra.mxu0 0
      %2230 = vmatprep.subr.bf16.mxu0 0
      %2231 = vmatpush1.bf16.msra.mxu0 0
      %2232 = vmatprep.subr.bf16.mxu0 0
      %2233 = vmatpush1.bf16.msra.mxu0 0
      %2234 = vmatprep.subr.bf16.mxu0 0
      %2235 = vmatpush1.bf16.msra.mxu0 0
      %2236 = vmatprep.subr.bf16.mxu0 0
      %2237 = vmatpush1.bf16.msra.mxu0 0
      %2238 = vmatprep.subr.bf16.mxu0 0
      %2239 = vmatpush1.bf16.msra.mxu0 0
      %2240 = vmatprep.subr.bf16.mxu0 0
      %2241 = vmatpush1.bf16.msra.mxu0 0
      %2242 = vmatprep.subr.bf16.mxu0 0
      %2243 = vmatpush1.bf16.msra.mxu0 0
      %2244 = vmatprep.mubr.bf16.mxu0 0
      %2245 = vmatmul.mubr.bf16.gmra.mrb[0].mxu0 %v2207
      %v2246 = vpop.f32.mrb[0].mxu0
      %v2247 = vadd.f32 0.0, %v2246
      %v2248 = vpop.f32.mrb[0].mxu0
      %v2249 = vadd.f32 0.0, %v2248
      %v2250 = vpop.f32.mrb[0].mxu0
      %v2251 = vadd.f32 0.0, %v2250
      %v2252 = vpop.f32.mrb[0].mxu0
      %v2253 = vadd.f32 0.0, %v2252
      %2254 = vmatprep.mubr.bf16.mxu0 0
      %2255 = vmatmul.mubr.bf16.gmra.mrb[0].mxu0 %v2210
      %v2256 = vpop.f32.mrb[0].mxu0
      %v2257 = vadd.f32 0.0, %v2256
      %v2258 = vpop.f32.mrb[0].mxu0
      %v2259 = vadd.f32 0.0, %v2258
      %v2260 = vpop.f32.mrb[0].mxu0
      %v2261 = vadd.f32 0.0, %v2260
      %v2262 = vpop.f32.mrb[0].mxu0
      %v2263 = vadd.f32 0.0, %v2262
      %2264 = vdwg.mxu0
      %v2265 = vadd.f32 %v2111, %v2247
      %v2266 = vadd.f32 %v2112, %v2249
      %v2267 = vadd.f32 %v2113, %v2251
      %v2268 = vadd.f32 %v2114, %v2253
      %v2269 = vadd.f32 %v2115, %v2257
      %v2270 = vadd.f32 %v2116, %v2259
      %v2271 = vadd.f32 %v2117, %v2261
      %v2272 = vadd.f32 %v2118, %v2263
      %v2273 = vld [vmem:[%s6] sm:$0xff]
      %v2274 = vld [vmem:[%s6 + $0x8] sm:$0xff]
      %v2275 = vld [vmem:[%s6 + $0x10] sm:$0xff]
      %v2276 = vld [vmem:[%s6 + $0x18] sm:$0xff]
      %2278 = vset.pattern.permute.xlu0 0
      %2279 = vperm.xlu0 %2278, %v2273
      %v2280 = vpop.permute.xlu0 %2279
      %2283 = vset.pattern.permute.xlu0 0
      %2284 = vperm.xlu0 %2283, %v2274
      %v2285 = vpop.permute.xlu0 %2284
      %2288 = vset.pattern.permute.xlu0 0
      %2289 = vperm.xlu0 %2288, %v2275
      %v2290 = vpop.permute.xlu0 %2289
      %2293 = vset.pattern.permute.xlu0 0
      %2294 = vperm.xlu0 %2293, %v2276
      %v2295 = vpop.permute.xlu0 %2294
      %v2297 = vmul.f32 %v2265, %v2280
      %v2298 = vmul.f32 %v2266, %v2280
      %v2299 = vmul.f32 %v2267, %v2285
      %v2300 = vmul.f32 %v2268, %v2285
      %v2301 = vmul.f32 %v2269, %v2290
      %v2302 = vmul.f32 %v2270, %v2290
      %v2303 = vmul.f32 %v2271, %v2295
      %v2304 = vmul.f32 %v2272, %v2295
      %v2305 = vld [vmem:[%s7] sm:$0xff]
      %v2306 = vld [vmem:[%s7 + $0x8] sm:$0xff]
      %v2307 = vld [vmem:[%s7 + $0x10] sm:$0xff]
      %v2308 = vld [vmem:[%s7 + $0x18] sm:$0xff]
      %2310 = vset.pattern.permute.xlu0 0
      %2311 = vperm.xlu0 %2310, %v2305
      %v2312 = vpop.permute.xlu0 %2311
      %2315 = vset.pattern.permute.xlu0 0
      %2316 = vperm.xlu0 %2315, %v2306
      %v2317 = vpop.permute.xlu0 %2316
      %2320 = vset.pattern.permute.xlu0 0
      %2321 = vperm.xlu0 %2320, %v2307
      %v2322 = vpop.permute.xlu0 %2321
      %2325 = vset.pattern.permute.xlu0 0
      %2326 = vperm.xlu0 %2325, %v2308
      %v2327 = vpop.permute.xlu0 %2326
      %v2329 = vadd.f32 %v2297, %v2312
      %v2330 = vadd.f32 %v2298, %v2312
      %v2331 = vadd.f32 %v2299, %v2317
      %v2332 = vadd.f32 %v2300, %v2317
      %v2333 = vadd.f32 %v2301, %v2322
      %v2334 = vadd.f32 %v2302, %v2322
      %v2335 = vadd.f32 %v2303, %v2327
      %v2336 = vadd.f32 %v2304, %v2327
      %v2337 = vmax.f32 %v2329, 0.0
      %v2338 = vmax.f32 %v2330, 0.0
      %v2339 = vmax.f32 %v2331, 0.0
      %v2340 = vmax.f32 %v2332, 0.0
      %v2341 = vmax.f32 %v2333, 0.0
      %v2342 = vmax.f32 %v2334, 0.0
      %v2343 = vmax.f32 %v2335, 0.0
      %v2344 = vmax.f32 %v2336, 0.0
      %v2345 = vld [vmem:[%s8] sm:$0xff]
      %v2346 = vld [vmem:[%s8 + $0x8] sm:$0xff]
      %v2347 = vld [vmem:[%s8 + $0x10] sm:$0xff]
      %v2348 = vld [vmem:[%s8 + $0x18] sm:$0xff]
      %2350 = vset.pattern.permute.xlu0 0
      %2351 = vperm.xlu0 %2350, %v2345
      %v2352 = vpop.permute.xlu0 %2351
      %2355 = vset.pattern.permute.xlu0 0
      %2356 = vperm.xlu0 %2355, %v2346
      %v2357 = vpop.permute.xlu0 %2356
      %2360 = vset.pattern.permute.xlu0 0
      %2361 = vperm.xlu0 %2360, %v2347
      %v2362 = vpop.permute.xlu0 %2361
      %2365 = vset.pattern.permute.xlu0 0
      %2366 = vperm.xlu0 %2365, %v2348
      %v2367 = vpop.permute.xlu0 %2366
      %v2369 = vmul.f32 %v2337, %v2352
      %v2370 = vmul.f32 %v2338, %v2352
      %v2371 = vmul.f32 %v2339, %v2357
      %v2372 = vmul.f32 %v2340, %v2357
      %v2373 = vmul.f32 %v2341, %v2362
      %v2374 = vmul.f32 %v2342, %v2362
      %v2375 = vmul.f32 %v2343, %v2367
      %v2376 = vmul.f32 %v2344, %v2367
      %v2377 = vadd.f32 %v2369, %v2371
      %v2378 = vadd.f32 %v2377, %v2373
      %v2379 = vadd.f32 %v2378, %v2375
      %v2380 = vrot.slane %v2379, 4
      %v2381 = vadd.f32 %v2379, %v2380
      %v2382 = vrot.slane %v2381, 2
      %v2383 = vadd.f32 %v2381, %v2382
      %v2384 = vrot.slane %v2383, 1
      %v2385 = vadd.f32 %v2383, %v2384
      %v2386 = vadd.f32 %v2370, %v2372
      %v2387 = vadd.f32 %v2386, %v2374
      %v2388 = vadd.f32 %v2387, %v2376
      %v2389 = vrot.slane %v2388, 4
      %v2390 = vadd.f32 %v2388, %v2389
      %v2391 = vrot.slane %v2390, 2
      %v2392 = vadd.f32 %v2390, %v2391
      %v2393 = vrot.slane %v2392, 1
      %v2394 = vadd.f32 %v2392, %v2393
      %v2395 = vld [vmem:[#allocation3] sm:$0x1]
      %2397 = vset.pattern.permute.xlu0 0
      %2398 = vperm.xlu0 %2397, %v2395
      %v2399 = vpop.permute.xlu0 %2398
      %v2401 = vlaneseq
      %v2402 = vshrl.u32 %v2401, 7
      %v2403 = vsub.s32 0, %v2402
      %v2404 = vrot.slane %v2399, %v2403
      %v2405 = vadd.f32 %v2385, %v2404
      %v2406 = vadd.f32 %v2394, %v2404
      %v2407 = vxor.u32 %v2405, 2147483648
      %v2408 = vxor.u32 %v2406, 2147483648
      %v2409 = vmul.f32 %v2407, 1.442695
      %v2410 = vpow.pop %v2409
      %v2411 = vmul.f32 %v2408, 1.442695
      %v2412 = vpow.pop %v2411
      %v2413 = vadd.f32 %v2410, 1.0
      %v2414 = vadd.f32 %v2412, 1.0
      %v2415 = vrcp.pop %v2413
      %v2416 = vmul.f32 1.0, %v2415
      %v2417 = vrcp.pop %v2414
      %v2418 = vmul.f32 1.0, %v2417
      %v2421 = vcombine.low %v2416, %v2418
      %v2423 = vunpack.c.l.s4 1966171168
      %v2424 = vunpack.c.0.s8 %v2423
      %v2425 = vlaneseq
      %v2426 = vshrl.u32 %v2425, 7
      %v2427 = vsub.s32 %v2424, %v2426
      %v2428 = vrot.slane %v2421, %v2427
      %v2430 = vunpack.c.l.s4 1966171168
      %v2431 = vunpack.c.0.s8 %v2430
      %v2432 = vlaneseq
      %v2433 = vshrl.u32 %v2432, 7
      %v2434 = vsub.s32 %v2431, %v2433
      %v2435 = vrot.slane %v2428, %v2434
      %v2437 = vlaneseq
      %vm2438 = vcmp.ge.s32.totalorder %v2437, 0
      %vm2439 = vcmp.lt.s32.totalorder %v2437, 256
      %vm2440 = vmand %vm2438, %vm2439
      %2441 = vst.msk [vmem:[%s359] sm:$0x3] %vm2440, %v2435
      %p2442 = scmp.lt.s32.totalorder %s23, 1
      %s2443 = scalar_select %p2442, %s23, 1
      %s2444 = smul.addr %s2443, 2
      %s2445 = scalar_lea.vmem %s10, %s2444
      // Predicated region
      $region61: #{attention_forward.1} parent=59 // pred_check
        %p2446 = pneg %p256
      $region62: #{attention_forward.1} parent=59 // pred_check_branch
        %2448 = sbr.rel (%p2446) target = $region64
      $region63: #{attention_forward.1} parent=59 // pred_region
        _
      $region64: #{attention_forward.1} parent=59 // pred_fallthru
        _
    $region60: #{attention_forward.1} parent=5 // pred_fallthru
      _
    %p2449 = scmp.le.s32.totalorder 2, %s18
    // Predicated region
    $region65: #{attention_forward.1} parent=5 // pred_check
      %p2450 = pneg %p2449
    $region66: #{attention_forward.1} parent=5 // pred_check_branch
      %2452 = sbr.rel (%p2450) target = $region68
    $region67: #{attention_forward.1} parent=5 // pred_region
      %s2453 = ssub.s32 %s18, 2
      // Predicated region
      $region69: #{attention_forward.1} parent=67 // pred_check
        %p2454 = pneg %p262
      $region70: #{attention_forward.1} parent=67 // pred_check_branch
        %2456 = sbr.rel (%p2454) target = $region72
      $region71: #{attention_forward.1} parent=67 // pred_region
        %p2457 = scmp.lt.s32.totalorder %s24, 1
        %s2458 = scalar_select %p2457, %s24, 1
        %s2459 = smul.addr %s2458, 2
        %s2460 = scalar_lea.vmem %s10, %s2459
      $region72: #{attention_forward.1} parent=67 // pred_fallthru
        _
    $region68: #{attention_forward.1} parent=5 // pred_fallthru
      _
  $region6: #{attention_forward.1} parent=0 // loop_footer
    %s22 = sadd.s32 1, %s18
  $region7: #{attention_forward.1} parent=0 // loop_footer_branch
    %17 = sbr.rel target = $region3
  $region8: #{attention_forward.1} parent=0 // loop_exit
    _

</llo_original>
